<compile_context>
chip_gen: v6e
topology: v6e:2x2x1
jax: 0.10.0
libtpu: 0.0.40
codegen_flags: <defaults>
</compile_context>

<pallas_src>
import math
from functools import partial

import jax
import jax.numpy as jnp
from jax.experimental import pallas as pl
from jax.experimental.pallas import tpu as pltpu


def _round_up(x, m):
    return ((x + m - 1) // m) * m


def _ca_kernel(x_ref, w1_ref, w2_ref, o_ref, sum_ref, max_ref,
               *, s_total, ts, need_mask):
    """Fused global-avg/max pool + fc1 + ReLU + fc2 + sigmoid.

    Grid = (B, S_tiles).  Axis 0 (batch) is parallel; axis 1 (spatial) is the reduction
    axis — running sum / running max live in VMEM scratch across it.
    """
    s = pl.program_id(1)

    @pl.when(s == 0)
    def _():
        sum_ref[...] = jnp.zeros_like(sum_ref)
        max_ref[...] = jnp.full_like(max_ref, -jnp.inf)

    x = x_ref[...].astype(jnp.float32)                  # (1, C, ts), channels on sublanes
    if need_mask:
        idx = jax.lax.broadcasted_iota(jnp.int32, x.shape, 2) + s * ts
        valid = idx < s_total
        xs = jnp.where(valid, x, 0.0)
        xm = jnp.where(valid, x, -jnp.inf)
    else:
        xs = x
        xm = x
    sum_ref[...] += jnp.sum(xs, axis=-1)                # (1, C)
    max_ref[...] = jnp.maximum(max_ref[...], jnp.max(xm, axis=-1))

    @pl.when(s == pl.num_programs(1) - 1)
    def _():
        avg = sum_ref[...] * (1.0 / s_total)            # (1, C)
        mxv = max_ref[...]                              # (1, C)
        w1 = w1_ref[...]                                # (C, Hp) == fc1.weight^T (zero-padded)
        w2 = w2_ref[...]                                # (Hp, C) == fc2.weight^T (zero-padded)
        h_avg = jnp.maximum(
            jnp.dot(avg, w1, preferred_element_type=jnp.float32), 0.0)
        h_max = jnp.maximum(
            jnp.dot(mxv, w1, preferred_element_type=jnp.float32), 0.0)
        # fc2 has no bias => fc2(h_avg) + fc2(h_max) == fc2(h_avg + h_max)
        y = jnp.dot(h_avg + h_max, w2, preferred_element_type=jnp.float32)
        o_ref[...] = jax.nn.sigmoid(y).reshape(o_ref.shape)


@partial(jax.jit, static_argnames=("ts",))
def channel_attention(x, fc1_w, fc2_w, ts=1024):
    """x: (B, C, D, H, W); fc1_w: (C//16, C, 1, 1, 1); fc2_w: (C, C//16, 1, 1, 1)."""
    B, C, D, H, W = x.shape
    hidden = fc1_w.shape[0]
    S = D * H * W

    # Pure reshape (D,H,W are contiguous trailing dims of NCDHW) — no relayout.
    x3 = x.reshape(B, C, S)

    ts = min(ts, _round_up(S, 128))
    Sp = _round_up(S, ts)
    need_mask = Sp != S
    if need_mask:
        x3 = jnp.pad(x3, ((0, 0), (0, 0), (0, Sp - S)))

    # 1x1x1 conv weights -> transposed 2-D matrices, hidden dim zero-padded to sublane mult.
    hp = max(8, _round_up(hidden, 8))
    w1 = jnp.pad(fc1_w.reshape(hidden, C).T.astype(jnp.float32),
                 ((0, 0), (0, hp - hidden)))            # (C, hp)
    w2 = jnp.pad(fc2_w.reshape(C, hidden).T.astype(jnp.float32),
                 ((0, hp - hidden), (0, 0)))            # (hp, C)

    out = pl.pallas_call(
        partial(_ca_kernel, s_total=S, ts=ts, need_mask=need_mask),
        out_shape=jax.ShapeDtypeStruct((B, 1, C), jnp.float32),
        grid_spec=pltpu.PrefetchScalarGridSpec(
            num_scalar_prefetch=0,
            grid=(B, Sp // ts),
            in_specs=[
                pl.BlockSpec((1, C, ts), lambda b, s: (b, 0, s)),
                pl.BlockSpec((C, hp), lambda b, s: (0, 0)),
                pl.BlockSpec((hp, C), lambda b, s: (0, 0)),
            ],
            out_specs=pl.BlockSpec((1, 1, C), lambda b, s: (b, 0, 0)),
            scratch_shapes=[pltpu.VMEM((1, C), jnp.float32),   # running sum
                            pltpu.VMEM((1, C), jnp.float32)],  # running max
        ),
        compiler_params=pltpu.CompilerParams(
            dimension_semantics=("parallel", "arbitrary")),
    )(x3, w1, w2)

    return out.reshape(B, C, 1, 1, 1)


def channel_attention_ref(x, fc1_w, fc2_w):
    """Pure-JAX reference matching the PyTorch module."""
    B, C = x.shape[:2]
    hidden = fc1_w.shape[0]
    w1 = fc1_w.reshape(hidden, C)
    w2 = fc2_w.reshape(C, hidden)
    xf = x.reshape(B, C, -1).astype(jnp.float32)
    avg = jnp.mean(xf, axis=-1)
    mx = jnp.max(xf, axis=-1)

    def head(p):
        return jnp.maximum(p @ w1.T, 0.0) @ w2.T

    return jax.nn.sigmoid(head(avg) + head(mx)).reshape(B, C, 1, 1, 1)


if __name__ == "__main__":
    key = jax.random.PRNGKey(0)
    kx, k1, k2 = jax.random.split(key, 3)

    B, C, D, H, W = 2, 64, 8, 16, 16          # in_planes = 64
    hidden = C // 16                          # the module hardcodes // 16 (ignores ratio)

    x = jax.random.normal(kx, (B, C, D, H, W), jnp.float32)
    fc1_w = jax.random.normal(k1, (hidden, C, 1, 1, 1), jnp.float32) / math.sqrt(C)
    fc2_w = jax.random.normal(k2, (C, hidden, 1, 1, 1), jnp.float32) / math.sqrt(hidden)

    out = channel_attention(x, fc1_w, fc2_w)
    out = jax.block_until_ready(out)

    ref = channel_attention_ref(x, fc1_w, fc2_w)
    assert out.shape == (B, C, 1, 1, 1) and out.dtype == jnp.float32
    assert jnp.allclose(out, ref, rtol=1e-5, atol=1e-5), float(jnp.max(jnp.abs(out - ref)))
    print("KERNEL_OK")
</pallas_src>

<mosaic_0001>
module attributes {stable_mosaic.version = 11 : i64} {
  func.func @_ca_kernel(%arg0: i32, %arg1: i32, %arg2: memref<1x64x1024xf32, #tpu.memory_space<vmem>>, %arg3: memref<64x8xf32, #tpu.memory_space<vmem>>, %arg4: memref<8x64xf32, #tpu.memory_space<vmem>>, %arg5: memref<1x1x64xf32, #tpu.memory_space<vmem>>, %arg6: memref<1x64xf32, #tpu.memory_space<vmem>>, %arg7: memref<1x64xf32, #tpu.memory_space<vmem>>) attributes {dimension_semantics = [#tpu.dimension_semantics<parallel>, #tpu.dimension_semantics<arbitrary>], iteration_bounds = array<i64: 2, 2>, scalar_prefetch = 0 : i64, scratch_operands = 2 : i64, tpu.core_type = #tpu.core_type<tc>, window_params = [{transform_indices = @transform_0, window_bounds = array<i64: 1, 64, 1024>}, {pipeline_mode = #tpu.pipeline_mode<synchronous>, transform_indices = @transform_1, window_bounds = array<i64: 64, 8>}, {pipeline_mode = #tpu.pipeline_mode<synchronous>, transform_indices = @transform_2, window_bounds = array<i64: 8, 64>}, {transform_indices = @transform_3, window_bounds = array<i64: 1, 1, 64>}]} {
    %c0_i32 = arith.constant 0 : i32
    %0 = arith.cmpi eq, %arg1, %c0_i32 : i32
    %1 = arith.extui %0 : i1 to i32
    %c0_i32_0 = arith.constant 0 : i32
    %2 = arith.cmpi ne, %1, %c0_i32_0 : i32
    scf.if %2 {
      %cst_13 = arith.constant 0.000000e+00 : f32
      %15 = vector.broadcast %cst_13 : f32 to vector<1x64xf32>
      %c0_14 = arith.constant 0 : index
      %c0_15 = arith.constant 0 : index
      %16 = vector.load %arg6[%c0_14, %c0_15] : memref<1x64xf32, #tpu.memory_space<vmem>>, vector<1x64xf32>
      tpu.vector_store %arg6[%c0_14, %c0_15], %15 {strides = array<i32>} : memref<1x64xf32, #tpu.memory_space<vmem>>, vector<1x64xf32>,
      %cst_16 = arith.constant 0xFF800000 : f32
      %17 = vector.broadcast %cst_16 : f32 to vector<1x64xf32>
      %c0_17 = arith.constant 0 : index
      %c0_18 = arith.constant 0 : index
      %18 = vector.load %arg7[%c0_17, %c0_18] : memref<1x64xf32, #tpu.memory_space<vmem>>, vector<1x64xf32>
      tpu.vector_store %arg7[%c0_17, %c0_18], %17 {strides = array<i32>} : memref<1x64xf32, #tpu.memory_space<vmem>>, vector<1x64xf32>,
    } else {
    }
    %c0 = arith.constant 0 : index
    %c0_1 = arith.constant 0 : index
    %c0_2 = arith.constant 0 : index
    %3 = vector.load %arg2[%c0, %c0_1, %c0_2] : memref<1x64x1024xf32, #tpu.memory_space<vmem>>, vector<1x64x1024xf32>
    %c0_3 = arith.constant 0 : index
    %c0_4 = arith.constant 0 : index
    %4 = vector.load %arg6[%c0_3, %c0_4] : memref<1x64xf32, #tpu.memory_space<vmem>>, vector<1x64xf32>
    %cst = arith.constant dense<0.000000e+00> : vector<1x64xf32>
    %5 = vector.multi_reduction <add>, %3, %cst [2] : vector<1x64x1024xf32> to vector<1x64xf32>
    %6 = arith.addf %4, %5 : vector<1x64xf32>
    %c0_5 = arith.constant 0 : index
    %c0_6 = arith.constant 0 : index
    %7 = vector.load %arg6[%c0_5, %c0_6] : memref<1x64xf32, #tpu.memory_space<vmem>>, vector<1x64xf32>
    tpu.vector_store %arg6[%c0_5, %c0_6], %6 {strides = array<i32>} : memref<1x64xf32, #tpu.memory_space<vmem>>, vector<1x64xf32>,
    %c0_7 = arith.constant 0 : index
    %c0_8 = arith.constant 0 : index
    %8 = vector.load %arg7[%c0_7, %c0_8] : memref<1x64xf32, #tpu.memory_space<vmem>>, vector<1x64xf32>
    %cst_9 = arith.constant dense<0xFF800000> : vector<1x64xf32>
    %9 = vector.multi_reduction <maximumf>, %3, %cst_9 [2] : vector<1x64x1024xf32> to vector<1x64xf32>
    %10 = arith.maximumf %8, %9 : vector<1x64xf32>
    %c0_10 = arith.constant 0 : index
    %c0_11 = arith.constant 0 : index
    %11 = vector.load %arg7[%c0_10, %c0_11] : memref<1x64xf32, #tpu.memory_space<vmem>>, vector<1x64xf32>
    tpu.vector_store %arg7[%c0_10, %c0_11], %10 {strides = array<i32>} : memref<1x64xf32, #tpu.memory_space<vmem>>, vector<1x64xf32>,
    %c1_i32 = arith.constant 1 : i32
    %12 = arith.cmpi eq, %arg1, %c1_i32 : i32
    %13 = arith.extui %12 : i1 to i32
    %c0_i32_12 = arith.constant 0 : i32
    %14 = arith.cmpi ne, %13, %c0_i32_12 : i32
    scf.if %14 {
      %c0_13 = arith.constant 0 : index
      %c0_14 = arith.constant 0 : index
      %15 = vector.load %arg6[%c0_13, %c0_14] : memref<1x64xf32, #tpu.memory_space<vmem>>, vector<1x64xf32>
      %cst_15 = arith.constant 4.8828125E-4 : f32
      %16 = vector.broadcast %cst_15 : f32 to vector<1x64xf32>
      %17 = arith.mulf %15, %16 : vector<1x64xf32>
      %c0_16 = arith.constant 0 : index
      %c0_17 = arith.constant 0 : index
      %18 = vector.load %arg7[%c0_16, %c0_17] : memref<1x64xf32, #tpu.memory_space<vmem>>, vector<1x64xf32>
      %c0_18 = arith.constant 0 : index
      %c0_19 = arith.constant 0 : index
      %19 = vector.load %arg3[%c0_18, %c0_19] : memref<64x8xf32, #tpu.memory_space<vmem>>, vector<64x8xf32>
      %c0_20 = arith.constant 0 : index
      %c0_21 = arith.constant 0 : index
      %20 = vector.load %arg4[%c0_20, %c0_21] : memref<8x64xf32, #tpu.memory_space<vmem>>, vector<8x64xf32>
      %cst_22 = arith.constant dense<0.000000e+00> : vector<1x8xf32>
      %21 = tpu.matmul %17, %19, %cst_22 {dimension_numbers = #tpu.dot_dimension_numbers<[1], [0], [0], [1], [0, 0, 1, 1], [], []>} : vector<1x64xf32>, vector<64x8xf32>, vector<1x8xf32> -> vector<1x8xf32>
      %cst_23 = arith.constant 0.000000e+00 : f32
      %22 = vector.broadcast %cst_23 : f32 to vector<1x8xf32>
      %23 = arith.maximumf %21, %22 : vector<1x8xf32>
      %cst_24 = arith.constant dense<0.000000e+00> : vector<1x8xf32>
      %24 = tpu.matmul %18, %19, %cst_24 {dimension_numbers = #tpu.dot_dimension_numbers<[1], [0], [0], [1], [0, 0, 1, 1], [], []>} : vector<1x64xf32>, vector<64x8xf32>, vector<1x8xf32> -> vector<1x8xf32>
      %cst_25 = arith.constant 0.000000e+00 : f32
      %25 = vector.broadcast %cst_25 : f32 to vector<1x8xf32>
      %26 = arith.maximumf %24, %25 : vector<1x8xf32>
      %27 = arith.addf %23, %26 : vector<1x8xf32>
      %cst_26 = arith.constant dense<0.000000e+00> : vector<1x64xf32>
      %28 = tpu.matmul %27, %20, %cst_26 {dimension_numbers = #tpu.dot_dimension_numbers<[1], [0], [0], [1], [0, 0, 1, 1], [], []>} : vector<1x8xf32>, vector<8x64xf32>, vector<1x64xf32> -> vector<1x64xf32>
      %29 = arith.negf %28 : vector<1x64xf32>
      %30 = math.exp %29 : vector<1x64xf32>
      %cst_27 = arith.constant 1.000000e+00 : f32
      %31 = vector.broadcast %cst_27 : f32 to vector<1x64xf32>
      %32 = arith.addf %31, %30 : vector<1x64xf32>
      %33 = arith.divf %31, %32 : vector<1x64xf32>
      %34 = vector.shape_cast %33 : vector<1x64xf32> to vector<1x1x64xf32>
      %c0_28 = arith.constant 0 : index
      %c0_29 = arith.constant 0 : index
      %c0_30 = arith.constant 0 : index
      %35 = vector.load %arg5[%c0_28, %c0_29, %c0_30] : memref<1x1x64xf32, #tpu.memory_space<vmem>>, vector<1x1x64xf32>
      tpu.vector_store %arg5[%c0_28, %c0_29, %c0_30], %34 {strides = array<i32>} : memref<1x1x64xf32, #tpu.memory_space<vmem>>, vector<1x1x64xf32>,
    } else {
    }
    return
  }
  func.func @transform_0(%arg0: i32, %arg1: i32) -> (i32, i32, i32) {
    %c0_i32 = arith.constant 0 : i32
    %c0_i32_0 = arith.constant 0 : i32
    return %arg0, %c0_i32, %arg1 : i32, i32, i32
  }
  func.func @transform_1(%arg0: i32, %arg1: i32) -> (i32, i32) {
    %c0_i32 = arith.constant 0 : i32
    %c0_i32_0 = arith.constant 0 : i32
    %c0_i32_1 = arith.constant 0 : i32
    return %c0_i32, %c0_i32_0 : i32, i32
  }
  func.func @transform_2(%arg0: i32, %arg1: i32) -> (i32, i32) {
    %c0_i32 = arith.constant 0 : i32
    %c0_i32_0 = arith.constant 0 : i32
    %c0_i32_1 = arith.constant 0 : i32
    return %c0_i32, %c0_i32_0 : i32, i32
  }
  func.func @transform_3(%arg0: i32, %arg1: i32) -> (i32, i32, i32) {
    %c0_i32 = arith.constant 0 : i32
    %c0_i32_0 = arith.constant 0 : i32
    %c0_i32_1 = arith.constant 0 : i32
    return %arg0, %c0_i32, %c0_i32_0 : i32, i32, i32
  }
}

</mosaic_0001>

<llo_original>
// kernel: channel_attention.1
$region0: #{channel_attention.1}
  #allocation0 [shape = 'u32[]', space=smem, size = 0x4, offset = 0x4, fixed_abs, tag = 'smem constant byte address 0x4 - core index']
  #allocation1 [shape = 'u32[144,128]{1,0:T(1,128)}', space=vmem, size = 0x12000, scoped, tag = 'internal scratch']
  #allocation2 [shape = 'f32[1,64]{1,0:T(1,128)}', space=vmem, size = 0x200, scoped, tag = 'scratch operand']
  #allocation3 [shape = 'f32[1,64]{1,0:T(1,128)}', space=vmem, size = 0x200, scoped, tag = 'scratch operand']
  %s0 = inlined_call_operand.vmem [shape: f32[2,64,2048], index: 0, kind: input, shape index: {}]
  %s1 = inlined_call_operand.vmem [shape: f32[64,8], index: 1, kind: input, shape index: {}]
  %s2 = inlined_call_operand.vmem [shape: f32[8,64], index: 2, kind: input, shape index: {}]
  %s3 = inlined_call_operand.hbm [shape: f32[2,1,64], index: 3, kind: output, shape index: {}]
  %s4 = sld [smem:[#allocation0]]
  $region76: #{channel_attention.1} parent=0
    _
  %s6 = ssub.s32 1, %s4
  %s7 = scalar_select 0, %s6, %s4
  $region1: #{channel_attention.1} parent=0
    #allocation4 [shape = 'u8[524288]{0}', space=vmem, size = 0x80000, scoped, tag = 'input window, operand 0']
    #allocation5 [shape = 'u8[1024]{0}', space=vmem, size = 0x400, scoped, tag = 'output window, operand 0']
    #allocation6 [shape = 's32[2]{0}', space=sflag, size = 0x8, scoped, tag = 'scoped memory for channel_attention.1']
    %8 = vsyncpa [#allocation6], 0
    %s9 = scalar_lea.sflag [#allocation6], 1
    %10 = vsyncpa %s9, 0
    loop: start=0, step=1, limit=6
    $region2: #{channel_attention.1} parent=1 // loop_pre_header
      _
    $region3: #{channel_attention.1} parent=1 // loop_header
      %s12 = sphi 0, %s16
      %p13 = scmp.ge.s32.totalorder %s12, 6
      %s19 = sphi 0, %s31
      %s20 = sphi 0, %s27
      %s21 = sphi 0, %s19
      %s22 = sphi 0, %s20
      %s23 = sphi 0, %s21
      %s24 = sphi 0, %s22
      %s36 = sphi 0, %s38
      %s39 = sphi 0, %s36
      %s40 = sphi 0, %s39
      %s56 = sphi 0, %s40
      %s60 = sphi 0, %s60
      %s62 = sphi 0, %s60
      %s63 = sphi 0, %s62
      %s77 = sphi 0, %s63
      %s81 = sphi 0, %s81
      %s83 = sphi 0, %s81
      %s84 = sphi 0, %s83
      %s98 = sphi 0, %s84
      %s104 = sphi 0, %s106
      %s107 = sphi 0, %s104
      %s108 = sphi 0, %s107
      %s124 = sphi 0, %s108
    $region4: #{channel_attention.1} parent=1 // loop_header_branch
      %15 = sbr.rel (%p13) target = $region8
    $region5: #{channel_attention.1} parent=1 // loop_body
      %s17 = ssub.s32 %s12, 1
      %s18 = ssub.s32 %s12, 2
      %s25 = sadd.s32 1, %s20
      %p26 = scmp.ge.s32.totalorder %s25, 2
      %s27 = scalar_select %p26, 0, %s25
      %s28 = sadd.s32 1, %s19
      %s29 = scalar_select %p26, %s28, %s19
      %p30 = scmp.ge.s32.totalorder %s29, 2
      %s31 = scalar_select %p30, 0, %s29
      %s32 = ssub.s32 %s19, %s31
      %s33 = ssub.s32 %s20, %s27
      %s34 = sor.u32 %s32, %s33
      %p35 = scmp.eq.s32.totalorder %s34, 0
      %s37 = sadd.s32 %s36, 1
      %s38 = scalar_select %p35, %s36, %s37
      %p41 = pneg %p35
      %p42 = scmp.eq.s32.totalorder %s12, 3
      %p43 = por %p41, %p42
      %p44 = scmp.ne.s32.totalorder %s36, %s39
      %p45 = scmp.eq.s32.totalorder %s12, 0
      %p46 = por %p44, %p45
      %p47 = scmp.ne.s32.totalorder %s36, %s39
      %p48 = scmp.eq.s32.totalorder %s17, 3
      %p49 = por %p47, %p48
      %p50 = scmp.ne.s32.totalorder %s39, %s40
      %p51 = scmp.eq.s32.totalorder %s17, 0
      %p52 = por %p50, %p51
      %p53 = scmp.ne.s32.totalorder %s39, %s40
      %p54 = scmp.eq.s32.totalorder %s18, 3
      %p55 = por %p53, %p54
      %p57 = scmp.ne.s32.totalorder %s40, %s56
      %p58 = scmp.eq.s32.totalorder %s18, 0
      %p59 = por %p57, %p58
      %s61 = sadd.s32 %s60, 1
      %p64 = scmp.eq.s32.totalorder %s12, 3
      %p65 = scmp.ne.s32.totalorder %s60, %s62
      %p66 = scmp.eq.s32.totalorder %s12, 0
      %p67 = por %p65, %p66
      %p68 = scmp.ne.s32.totalorder %s60, %s62
      %p69 = scmp.eq.s32.totalorder %s17, 3
      %p70 = por %p68, %p69
      %p71 = scmp.ne.s32.totalorder %s62, %s63
      %p72 = scmp.eq.s32.totalorder %s17, 0
      %p73 = por %p71, %p72
      %p74 = scmp.ne.s32.totalorder %s62, %s63
      %p75 = scmp.eq.s32.totalorder %s18, 3
      %p76 = por %p74, %p75
      %p78 = scmp.ne.s32.totalorder %s63, %s77
      %p79 = scmp.eq.s32.totalorder %s18, 0
      %p80 = por %p78, %p79
      %s82 = sadd.s32 %s81, 1
      %p85 = scmp.eq.s32.totalorder %s12, 3
      %p86 = scmp.ne.s32.totalorder %s81, %s83
      %p87 = scmp.eq.s32.totalorder %s12, 0
      %p88 = por %p86, %p87
      %p89 = scmp.ne.s32.totalorder %s81, %s83
      %p90 = scmp.eq.s32.totalorder %s17, 3
      %p91 = por %p89, %p90
      %p92 = scmp.ne.s32.totalorder %s83, %s84
      %p93 = scmp.eq.s32.totalorder %s17, 0
      %p94 = por %p92, %p93
      %p95 = scmp.ne.s32.totalorder %s83, %s84
      %p96 = scmp.eq.s32.totalorder %s18, 3
      %p97 = por %p95, %p96
      %p99 = scmp.ne.s32.totalorder %s84, %s98
      %p100 = scmp.eq.s32.totalorder %s18, 0
      %p101 = por %p99, %p100
      %s102 = ssub.s32 %s19, %s31
      %p103 = scmp.eq.s32.totalorder %s102, 0
      %s105 = sadd.s32 %s104, 1
      %s106 = scalar_select %p103, %s104, %s105
      %p109 = pneg %p103
      %p110 = scmp.eq.s32.totalorder %s12, 3
      %p111 = por %p109, %p110
      %p112 = scmp.ne.s32.totalorder %s104, %s107
      %p113 = scmp.eq.s32.totalorder %s12, 0
      %p114 = por %p112, %p113
      %p115 = scmp.ne.s32.totalorder %s104, %s107
      %p116 = scmp.eq.s32.totalorder %s17, 3
      %p117 = por %p115, %p116
      %p118 = scmp.ne.s32.totalorder %s107, %s108
      %p119 = scmp.eq.s32.totalorder %s17, 0
      %p120 = por %p118, %p119
      %p121 = scmp.ne.s32.totalorder %s107, %s108
      %p122 = scmp.eq.s32.totalorder %s18, 3
      %p123 = por %p121, %p122
      %p125 = scmp.ne.s32.totalorder %s108, %s124
      %p126 = scmp.eq.s32.totalorder %s18, 0
      %p127 = por %p125, %p126
      %p128 = scmp.le.s32.totalorder 1, %s12
      %p129 = scmp.lt.s32.totalorder %s12, 5
      %p130 = pnand %p128, %p129
      %p131 = pneg %p130
      // Predicated region
      $region9: #{channel_attention.1} parent=5 // pred_check
        _
      $region10: #{channel_attention.1} parent=5 // pred_check_branch
        %133 = sbr.rel (%p130) target = $region12
      $region11: #{channel_attention.1} parent=5 // pred_region
        %s134 = ssub.s32 %s12, 1
        // Predicated region
        $region13: #{channel_attention.1} parent=11 // pred_check
          %p135 = pneg %p73
        $region14: #{channel_attention.1} parent=11 // pred_check_branch
          %137 = sbr.rel (%p135) target = $region16
        $region15: #{channel_attention.1} parent=11 // pred_region
          _
        $region16: #{channel_attention.1} parent=11 // pred_fallthru
          _
        // Predicated region
        $region17: #{channel_attention.1} parent=11 // pred_check
          %p138 = pneg %p94
        $region18: #{channel_attention.1} parent=11 // pred_check_branch
          %140 = sbr.rel (%p138) target = $region20
        $region19: #{channel_attention.1} parent=11 // pred_region
          _
        $region20: #{channel_attention.1} parent=11 // pred_fallthru
          _
      $region12: #{channel_attention.1} parent=5 // pred_fallthru
        _
      %p141 = scmp.lt.s32.totalorder %s12, 4
      // Predicated region
      $region21: #{channel_attention.1} parent=5 // pred_check
        %p142 = pneg %p141
      $region22: #{channel_attention.1} parent=5 // pred_check_branch
        %144 = sbr.rel (%p142) target = $region24
      $region23: #{channel_attention.1} parent=5 // pred_region
        // Predicated region
        $region25: #{channel_attention.1} parent=23 // pred_check
          %p145 = pneg %p46
        $region26: #{channel_attention.1} parent=23 // pred_check_branch
          %147 = sbr.rel (%p145) target = $region28
        $region27: #{channel_attention.1} parent=23 // pred_region
          %s148 = sand.u32 %s36, 1
          %s149 = sand.u32 %s36, 1
          %s150 = smul.addr %s149, 512
          %s151 = scalar_lea.vmem [#allocation4], %s150
          %s152 = smul.u32 8, %s20
          %s153 = smul.addr %s19, 128
          %s154 = sadd.s32 %s152, %s153
          %s155 = smul.addr %s154, 8
          %s156 = scalar_lea.vmem %s0, %s155
          // Predicated region
          $region29: #{channel_attention.1} parent=27 // pred_check
            _
          $region30: #{channel_attention.1} parent=27 // pred_check_branch
            %158 = sbr.rel (0) target = $region32
          $region31: #{channel_attention.1} parent=27 // pred_region
            // Predicated region
            $region33: #{channel_attention.1} parent=31 // pred_check
              _
            $region34: #{channel_attention.1} parent=31 // pred_check_branch
              %160 = sbr.rel (0) target = $region36
            $region35: #{channel_attention.1} parent=31 // pred_region
              loop: start=0, step=1, limit=1
              $region37: #{channel_attention.1} parent=35 // loop_pre_header
                _
              $region38: #{channel_attention.1} parent=35 // loop_header
                %s162 = sphi 0, %s166
                %p163 = scmp.ge.s32.totalorder %s162, 1
                %s167 = sphi %s156, %s156
                %s168 = sphi %s151, %s151
              $region39: #{channel_attention.1} parent=35 // loop_header_branch
                %165 = sbr.rel (%p163) target = $region43
              $region40: #{channel_attention.1} parent=35 // loop_body
                %v169 = vld [vmem:[%s167] sm:$0xff]
                %170 = vst [vmem:[%s168] sm:$0xff] %v169
                %v171 = vld [vmem:[%s167 + $0x8] sm:$0xff]
                %172 = vst [vmem:[%s168 + $0x8] sm:$0xff] %v171
                %v173 = vld [vmem:[%s167 + $0x10] sm:$0xff]
                %174 = vst [vmem:[%s168 + $0x10] sm:$0xff] %v173
                %v175 = vld [vmem:[%s167 + $0x18] sm:$0xff]
                %176 = vst [vmem:[%s168 + $0x18] sm:$0xff] %v175
                %v177 = vld [vmem:[%s167 + $0x20] sm:$0xff]
                %178 = vst [vmem:[%s168 + $0x20] sm:$0xff] %v177
                %v179 = vld [vmem:[%s167 + $0x28] sm:$0xff]
                %180 = vst [vmem:[%s168 + $0x28] sm:$0xff] %v179
                %v181 = vld [vmem:[%s167 + $0x30] sm:$0xff]
                %182 = vst [vmem:[%s168 + $0x30] sm:$0xff] %v181
                %v183 = vld [vmem:[%s167 + $0x38] sm:$0xff]
                %184 = vst [vmem:[%s168 + $0x38] sm:$0xff] %v183
                %v185 = vld [vmem:[%s167 + $0x80] sm:$0xff]
                %186 = vst [vmem:[%s168 + $0x40] sm:$0xff] %v185
                %v187 = vld [vmem:[%s167 + $0x88] sm:$0xff]
                %188 = vst [vmem:[%s168 + $0x48] sm:$0xff] %v187
                %v189 = vld [vmem:[%s167 + $0x90] sm:$0xff]
                %190 = vst [vmem:[%s168 + $0x50] sm:$0xff] %v189
                %v191 = vld [vmem:[%s167 + $0x98] sm:$0xff]
                %192 = vst [vmem:[%s168 + $0x58] sm:$0xff] %v191
                %v193 = vld [vmem:[%s167 + $0xa0] sm:$0xff]
                %194 = vst [vmem:[%s168 + $0x60] sm:$0xff] %v193
                %v195 = vld [vmem:[%s167 + $0xa8] sm:$0xff]
                %196 = vst [vmem:[%s168 + $0x68] sm:$0xff] %v195
                %v197 = vld [vmem:[%s167 + $0xb0] sm:$0xff]
                %198 = vst [vmem:[%s168 + $0x70] sm:$0xff] %v197
                %v199 = vld [vmem:[%s167 + $0xb8] sm:$0xff]
                %200 = vst [vmem:[%s168 + $0x78] sm:$0xff] %v199
                %v201 = vld [vmem:[%s167 + $0x100] sm:$0xff]
                %202 = vst [vmem:[%s168 + $0x80] sm:$0xff] %v201
                %v203 = vld [vmem:[%s167 + $0x108] sm:$0xff]
                %204 = vst [vmem:[%s168 + $0x88] sm:$0xff] %v203
                %v205 = vld [vmem:[%s167 + $0x110] sm:$0xff]
                %206 = vst [vmem:[%s168 + $0x90] sm:$0xff] %v205
                %v207 = vld [vmem:[%s167 + $0x118] sm:$0xff]
                %208 = vst [vmem:[%s168 + $0x98] sm:$0xff] %v207
                %v209 = vld [vmem:[%s167 + $0x120] sm:$0xff]
                %210 = vst [vmem:[%s168 + $0xa0] sm:$0xff] %v209
                %v211 = vld [vmem:[%s167 + $0x128] sm:$0xff]
                %212 = vst [vmem:[%s168 + $0xa8] sm:$0xff] %v211
                %v213 = vld [vmem:[%s167 + $0x130] sm:$0xff]
                %214 = vst [vmem:[%s168 + $0xb0] sm:$0xff] %v213
                %v215 = vld [vmem:[%s167 + $0x138] sm:$0xff]
                %216 = vst [vmem:[%s168 + $0xb8] sm:$0xff] %v215
                %v217 = vld [vmem:[%s167 + $0x180] sm:$0xff]
                %218 = vst [vmem:[%s168 + $0xc0] sm:$0xff] %v217
                %v219 = vld [vmem:[%s167 + $0x188] sm:$0xff]
                %220 = vst [vmem:[%s168 + $0xc8] sm:$0xff] %v219
                %v221 = vld [vmem:[%s167 + $0x190] sm:$0xff]
                %222 = vst [vmem:[%s168 + $0xd0] sm:$0xff] %v221
                %v223 = vld [vmem:[%s167 + $0x198] sm:$0xff]
                %224 = vst [vmem:[%s168 + $0xd8] sm:$0xff] %v223
                %v225 = vld [vmem:[%s167 + $0x1a0] sm:$0xff]
                %226 = vst [vmem:[%s168 + $0xe0] sm:$0xff] %v225
                %v227 = vld [vmem:[%s167 + $0x1a8] sm:$0xff]
                %228 = vst [vmem:[%s168 + $0xe8] sm:$0xff] %v227
                %v229 = vld [vmem:[%s167 + $0x1b0] sm:$0xff]
                %230 = vst [vmem:[%s168 + $0xf0] sm:$0xff] %v229
                %v231 = vld [vmem:[%s167 + $0x1b8] sm:$0xff]
                %232 = vst [vmem:[%s168 + $0xf8] sm:$0xff] %v231
                %v233 = vld [vmem:[%s167 + $0x200] sm:$0xff]
                %234 = vst [vmem:[%s168 + $0x100] sm:$0xff] %v233
                %v235 = vld [vmem:[%s167 + $0x208] sm:$0xff]
                %236 = vst [vmem:[%s168 + $0x108] sm:$0xff] %v235
                %v237 = vld [vmem:[%s167 + $0x210] sm:$0xff]
                %238 = vst [vmem:[%s168 + $0x110] sm:$0xff] %v237
                %v239 = vld [vmem:[%s167 + $0x218] sm:$0xff]
                %240 = vst [vmem:[%s168 + $0x118] sm:$0xff] %v239
                %v241 = vld [vmem:[%s167 + $0x220] sm:$0xff]
                %242 = vst [vmem:[%s168 + $0x120] sm:$0xff] %v241
                %v243 = vld [vmem:[%s167 + $0x228] sm:$0xff]
                %244 = vst [vmem:[%s168 + $0x128] sm:$0xff] %v243
                %v245 = vld [vmem:[%s167 + $0x230] sm:$0xff]
                %246 = vst [vmem:[%s168 + $0x130] sm:$0xff] %v245
                %v247 = vld [vmem:[%s167 + $0x238] sm:$0xff]
                %248 = vst [vmem:[%s168 + $0x138] sm:$0xff] %v247
                %v249 = vld [vmem:[%s167 + $0x280] sm:$0xff]
                %250 = vst [vmem:[%s168 + $0x140] sm:$0xff] %v249
                %v251 = vld [vmem:[%s167 + $0x288] sm:$0xff]
                %252 = vst [vmem:[%s168 + $0x148] sm:$0xff] %v251
                %v253 = vld [vmem:[%s167 + $0x290] sm:$0xff]
                %254 = vst [vmem:[%s168 + $0x150] sm:$0xff] %v253
                %v255 = vld [vmem:[%s167 + $0x298] sm:$0xff]
                %256 = vst [vmem:[%s168 + $0x158] sm:$0xff] %v255
                %v257 = vld [vmem:[%s167 + $0x2a0] sm:$0xff]
                %258 = vst [vmem:[%s168 + $0x160] sm:$0xff] %v257
                %v259 = vld [vmem:[%s167 + $0x2a8] sm:$0xff]
                %260 = vst [vmem:[%s168 + $0x168] sm:$0xff] %v259
                %v261 = vld [vmem:[%s167 + $0x2b0] sm:$0xff]
                %262 = vst [vmem:[%s168 + $0x170] sm:$0xff] %v261
                %v263 = vld [vmem:[%s167 + $0x2b8] sm:$0xff]
                %264 = vst [vmem:[%s168 + $0x178] sm:$0xff] %v263
                %v265 = vld [vmem:[%s167 + $0x300] sm:$0xff]
                %266 = vst [vmem:[%s168 + $0x180] sm:$0xff] %v265
                %v267 = vld [vmem:[%s167 + $0x308] sm:$0xff]
                %268 = vst [vmem:[%s168 + $0x188] sm:$0xff] %v267
                %v269 = vld [vmem:[%s167 + $0x310] sm:$0xff]
                %270 = vst [vmem:[%s168 + $0x190] sm:$0xff] %v269
                %v271 = vld [vmem:[%s167 + $0x318] sm:$0xff]
                %272 = vst [vmem:[%s168 + $0x198] sm:$0xff] %v271
                %v273 = vld [vmem:[%s167 + $0x320] sm:$0xff]
                %274 = vst [vmem:[%s168 + $0x1a0] sm:$0xff] %v273
                %v275 = vld [vmem:[%s167 + $0x328] sm:$0xff]
                %276 = vst [vmem:[%s168 + $0x1a8] sm:$0xff] %v275
                %v277 = vld [vmem:[%s167 + $0x330] sm:$0xff]
                %278 = vst [vmem:[%s168 + $0x1b0] sm:$0xff] %v277
                %v279 = vld [vmem:[%s167 + $0x338] sm:$0xff]
                %280 = vst [vmem:[%s168 + $0x1b8] sm:$0xff] %v279
                %v281 = vld [vmem:[%s167 + $0x380] sm:$0xff]
                %282 = vst [vmem:[%s168 + $0x1c0] sm:$0xff] %v281
                %v283 = vld [vmem:[%s167 + $0x388] sm:$0xff]
                %284 = vst [vmem:[%s168 + $0x1c8] sm:$0xff] %v283
                %v285 = vld [vmem:[%s167 + $0x390] sm:$0xff]
                %286 = vst [vmem:[%s168 + $0x1d0] sm:$0xff] %v285
                %v287 = vld [vmem:[%s167 + $0x398] sm:$0xff]
                %288 = vst [vmem:[%s168 + $0x1d8] sm:$0xff] %v287
                %v289 = vld [vmem:[%s167 + $0x3a0] sm:$0xff]
                %290 = vst [vmem:[%s168 + $0x1e0] sm:$0xff] %v289
                %v291 = vld [vmem:[%s167 + $0x3a8] sm:$0xff]
                %292 = vst [vmem:[%s168 + $0x1e8] sm:$0xff] %v291
                %v293 = vld [vmem:[%s167 + $0x3b0] sm:$0xff]
                %294 = vst [vmem:[%s168 + $0x1f0] sm:$0xff] %v293
                %v295 = vld [vmem:[%s167 + $0x3b8] sm:$0xff]
                %296 = vst [vmem:[%s168 + $0x1f8] sm:$0xff] %v295
              $region41: #{channel_attention.1} parent=35 // loop_footer
                %s166 = sadd.s32 1, %s162
              $region42: #{channel_attention.1} parent=35 // loop_footer_branch
                %161 = sbr.rel target = $region38
              $region43: #{channel_attention.1} parent=35 // loop_exit
                _
            $region36: #{channel_attention.1} parent=31 // pred_fallthru
              _
            // Predicated region
            $region44: #{channel_attention.1} parent=31 // pred_check
              _
            $region45: #{channel_attention.1} parent=31 // pred_check_branch
              %298 = sbr.rel target = $region47
            $region46: #{channel_attention.1} parent=31 // pred_region
              _
            $region47: #{channel_attention.1} parent=31 // pred_fallthru
              _
          $region32: #{channel_attention.1} parent=27 // pred_fallthru
            _
          %299 = vnop
        $region28: #{channel_attention.1} parent=23 // pred_fallthru
          _
      $region24: #{channel_attention.1} parent=5 // pred_fallthru
        _
      %p300 = scmp.le.s32.totalorder 1, %s12
      %p301 = scmp.lt.s32.totalorder %s12, 5
      %p302 = pnand %p300, %p301
      %p303 = pneg %p302
      // Predicated region
      $region48: #{channel_attention.1} parent=5 // pred_check
        _
      $region49: #{channel_attention.1} parent=5 // pred_check_branch
        %305 = sbr.rel (%p302) target = $region51
      $region50: #{channel_attention.1} parent=5 // pred_region
        %s306 = ssub.s32 %s12, 1
        %s307 = sand.u32 %s39, 1
        %s308 = sand.u32 %s39, 1
        %s309 = smul.addr %s308, 512
        %s310 = scalar_lea.vmem [#allocation4], %s309
        // Predicated region
        $region52: #{channel_attention.1} parent=50 // pred_check
          %p311 = pneg %p52
        $region53: #{channel_attention.1} parent=50 // pred_check_branch
          %313 = sbr.rel (%p311) target = $region55
        $region54: #{channel_attention.1} parent=50 // pred_region
          _
        $region55: #{channel_attention.1} parent=50 // pred_fallthru
          _
        %s314 = sand.u32 %s39, 1
        %s315 = sand.u32 %s39, 1
        %s316 = smul.addr %s315, 512
        %s317 = scalar_lea.vmem [#allocation4], %s316
        %p318 = pneg %p52
        %p319 = pneg %p49
        %p320 = pneg %p73
        %p321 = pneg %p70
        %p322 = pneg %p94
        %p323 = pneg %p91
        %p324 = pneg %p120
        %p325 = pneg %p117
        %s326 = sand.u32 %s107, 1
        %s327 = scalar_lea.sflag [#allocation6], %s326
        %s328 = sand.u32 %s107, 1
        %s329 = scalar_lea.vmem [#allocation5], %s328
        %s330 = smul.u32 8, %s22
        %p331 = scmp.eq.s32.totalorder %s22, 0
        // Predicated region
        $region56: #{channel_attention.1} parent=50 // pred_check
          %p332 = pneg %p331
        $region57: #{channel_attention.1} parent=50 // pred_check_branch
          %334 = sbr.rel (%p332) target = $region59
        $region58: #{channel_attention.1} parent=50 // pred_region
          %vm335 = vcmask 516096
          %336 = vst.msk [vmem:[#allocation2] sm:$0x1] %vm335, 0.0
          %337 = vst.msk [vmem:[#allocation3] sm:$0x1] %vm335, -inf
        $region59: #{channel_attention.1} parent=50 // pred_fallthru
          _
        %v338 = vld [vmem:[%s310] sm:$0xff]
        %v339 = vld [vmem:[%s310 + $0x8] sm:$0xff]
        %v340 = vld [vmem:[%s310 + $0x10] sm:$0xff]
        %v341 = vld [vmem:[%s310 + $0x18] sm:$0xff]
        %v342 = vld [vmem:[%s310 + $0x20] sm:$0xff]
        %v343 = vld [vmem:[%s310 + $0x28] sm:$0xff]
        %v344 = vld [vmem:[%s310 + $0x30] sm:$0xff]
        %v345 = vld [vmem:[%s310 + $0x38] sm:$0xff]
        %v346 = vld [vmem:[%s310 + $0x40] sm:$0xff]
        %v347 = vld [vmem:[%s310 + $0x48] sm:$0xff]
        %v348 = vld [vmem:[%s310 + $0x50] sm:$0xff]
        %v349 = vld [vmem:[%s310 + $0x58] sm:$0xff]
        %v350 = vld [vmem:[%s310 + $0x60] sm:$0xff]
        %v351 = vld [vmem:[%s310 + $0x68] sm:$0xff]
        %v352 = vld [vmem:[%s310 + $0x70] sm:$0xff]
        %v353 = vld [vmem:[%s310 + $0x78] sm:$0xff]
        %v354 = vld [vmem:[%s310 + $0x80] sm:$0xff]
        %v355 = vld [vmem:[%s310 + $0x88] sm:$0xff]
        %v356 = vld [vmem:[%s310 + $0x90] sm:$0xff]
        %v357 = vld [vmem:[%s310 + $0x98] sm:$0xff]
        %v358 = vld [vmem:[%s310 + $0xa0] sm:$0xff]
        %v359 = vld [vmem:[%s310 + $0xa8] sm:$0xff]
        %v360 = vld [vmem:[%s310 + $0xb0] sm:$0xff]
        %v361 = vld [vmem:[%s310 + $0xb8] sm:$0xff]
        %v362 = vld [vmem:[%s310 + $0xc0] sm:$0xff]
        %v363 = vld [vmem:[%s310 + $0xc8] sm:$0xff]
        %v364 = vld [vmem:[%s310 + $0xd0] sm:$0xff]
        %v365 = vld [vmem:[%s310 + $0xd8] sm:$0xff]
        %v366 = vld [vmem:[%s310 + $0xe0] sm:$0xff]
        %v367 = vld [vmem:[%s310 + $0xe8] sm:$0xff]
        %v368 = vld [vmem:[%s310 + $0xf0] sm:$0xff]
        %v369 = vld [vmem:[%s310 + $0xf8] sm:$0xff]
        %v370 = vld [vmem:[%s310 + $0x100] sm:$0xff]
        %v371 = vld [vmem:[%s310 + $0x108] sm:$0xff]
        %v372 = vld [vmem:[%s310 + $0x110] sm:$0xff]
        %v373 = vld [vmem:[%s310 + $0x118] sm:$0xff]
        %v374 = vld [vmem:[%s310 + $0x120] sm:$0xff]
        %v375 = vld [vmem:[%s310 + $0x128] sm:$0xff]
        %v376 = vld [vmem:[%s310 + $0x130] sm:$0xff]
        %v377 = vld [vmem:[%s310 + $0x138] sm:$0xff]
        %v378 = vld [vmem:[%s310 + $0x140] sm:$0xff]
        %v379 = vld [vmem:[%s310 + $0x148] sm:$0xff]
        %v380 = vld [vmem:[%s310 + $0x150] sm:$0xff]
        %v381 = vld [vmem:[%s310 + $0x158] sm:$0xff]
        %v382 = vld [vmem:[%s310 + $0x160] sm:$0xff]
        %v383 = vld [vmem:[%s310 + $0x168] sm:$0xff]
        %v384 = vld [vmem:[%s310 + $0x170] sm:$0xff]
        %v385 = vld [vmem:[%s310 + $0x178] sm:$0xff]
        %v386 = vld [vmem:[%s310 + $0x180] sm:$0xff]
        %v387 = vld [vmem:[%s310 + $0x188] sm:$0xff]
        %v388 = vld [vmem:[%s310 + $0x190] sm:$0xff]
        %v389 = vld [vmem:[%s310 + $0x198] sm:$0xff]
        %v390 = vld [vmem:[%s310 + $0x1a0] sm:$0xff]
        %v391 = vld [vmem:[%s310 + $0x1a8] sm:$0xff]
        %v392 = vld [vmem:[%s310 + $0x1b0] sm:$0xff]
        %v393 = vld [vmem:[%s310 + $0x1b8] sm:$0xff]
        %v394 = vld [vmem:[%s310 + $0x1c0] sm:$0xff]
        %v395 = vld [vmem:[%s310 + $0x1c8] sm:$0xff]
        %v396 = vld [vmem:[%s310 + $0x1d0] sm:$0xff]
        %v397 = vld [vmem:[%s310 + $0x1d8] sm:$0xff]
        %v398 = vld [vmem:[%s310 + $0x1e0] sm:$0xff]
        %v399 = vld [vmem:[%s310 + $0x1e8] sm:$0xff]
        %v400 = vld [vmem:[%s310 + $0x1f0] sm:$0xff]
        %v401 = vld [vmem:[%s310 + $0x1f8] sm:$0xff]
        %v402 = vld [vmem:[#allocation2] sm:$0x1]
        %v403 = vadd.f32 %v338, %v339
        %v404 = vadd.f32 %v403, %v340
        %v405 = vadd.f32 %v404, %v341
        %v406 = vadd.f32 %v405, %v342
        %v407 = vadd.f32 %v406, %v343
        %v408 = vadd.f32 %v407, %v344
        %v409 = vadd.f32 %v408, %v345
        %410 = vadd.xlane.f32.xlu0 %v409
        %v411 = vpop.xlane.xlu0 %410
        %v412 = vadd.f32 %v346, %v347
        %v413 = vadd.f32 %v412, %v348
        %v414 = vadd.f32 %v413, %v349
        %v415 = vadd.f32 %v414, %v350
        %v416 = vadd.f32 %v415, %v351
        %v417 = vadd.f32 %v416, %v352
        %v418 = vadd.f32 %v417, %v353
        %419 = vadd.xlane.f32.xlu0 %v418
        %v420 = vpop.xlane.xlu0 %419
        %v421 = vadd.f32 %v354, %v355
        %v422 = vadd.f32 %v421, %v356
        %v423 = vadd.f32 %v422, %v357
        %v424 = vadd.f32 %v423, %v358
        %v425 = vadd.f32 %v424, %v359
        %v426 = vadd.f32 %v425, %v360
        %v427 = vadd.f32 %v426, %v361
        %428 = vadd.xlane.f32.xlu0 %v427
        %v429 = vpop.xlane.xlu0 %428
        %v430 = vadd.f32 %v362, %v363
        %v431 = vadd.f32 %v430, %v364
        %v432 = vadd.f32 %v431, %v365
        %v433 = vadd.f32 %v432, %v366
        %v434 = vadd.f32 %v433, %v367
        %v435 = vadd.f32 %v434, %v368
        %v436 = vadd.f32 %v435, %v369
        %437 = vadd.xlane.f32.xlu0 %v436
        %v438 = vpop.xlane.xlu0 %437
        %v439 = vadd.f32 %v370, %v371
        %v440 = vadd.f32 %v439, %v372
        %v441 = vadd.f32 %v440, %v373
        %v442 = vadd.f32 %v441, %v374
        %v443 = vadd.f32 %v442, %v375
        %v444 = vadd.f32 %v443, %v376
        %v445 = vadd.f32 %v444, %v377
        %446 = vadd.xlane.f32.xlu0 %v445
        %v447 = vpop.xlane.xlu0 %446
        %v448 = vadd.f32 %v378, %v379
        %v449 = vadd.f32 %v448, %v380
        %v450 = vadd.f32 %v449, %v381
        %v451 = vadd.f32 %v450, %v382
        %v452 = vadd.f32 %v451, %v383
        %v453 = vadd.f32 %v452, %v384
        %v454 = vadd.f32 %v453, %v385
        %455 = vadd.xlane.f32.xlu0 %v454
        %v456 = vpop.xlane.xlu0 %455
        %v457 = vadd.f32 %v386, %v387
        %v458 = vadd.f32 %v457, %v388
        %v459 = vadd.f32 %v458, %v389
        %v460 = vadd.f32 %v459, %v390
        %v461 = vadd.f32 %v460, %v391
        %v462 = vadd.f32 %v461, %v392
        %v463 = vadd.f32 %v462, %v393
        %464 = vadd.xlane.f32.xlu0 %v463
        %v465 = vpop.xlane.xlu0 %464
        %v466 = vadd.f32 %v394, %v395
        %v467 = vadd.f32 %v466, %v396
        %v468 = vadd.f32 %v467, %v397
        %v469 = vadd.f32 %v468, %v398
        %v470 = vadd.f32 %v469, %v399
        %v471 = vadd.f32 %v470, %v400
        %v472 = vadd.f32 %v471, %v401
        %473 = vadd.xlane.f32.xlu0 %v472
        %v474 = vpop.xlane.xlu0 %473
        %v483 = vlaneseq
        %v484 = vshrl.u32 %v483, 7
        %v485 = vsub.s32 0, %v484
        %v486 = vrot.slane %v411, %v485
        %v487 = vlaneseq
        %v488 = vshrl.u32 %v487, 7
        %v489 = vsub.s32 1, %v488
        %v490 = vrot.slane %v411, %v489
        %v491 = vlaneseq
        %v492 = vshrl.u32 %v491, 7
        %v493 = vsub.s32 2, %v492
        %v494 = vrot.slane %v411, %v493
        %v495 = vlaneseq
        %v496 = vshrl.u32 %v495, 7
        %v497 = vsub.s32 3, %v496
        %v498 = vrot.slane %v411, %v497
        %v499 = vlaneseq
        %v500 = vshrl.u32 %v499, 7
        %v501 = vsub.s32 4, %v500
        %v502 = vrot.slane %v411, %v501
        %v503 = vlaneseq
        %v504 = vshrl.u32 %v503, 7
        %v505 = vsub.s32 5, %v504
        %v506 = vrot.slane %v411, %v505
        %v507 = vlaneseq
        %v508 = vshrl.u32 %v507, 7
        %v509 = vsub.s32 6, %v508
        %v510 = vrot.slane %v411, %v509
        %v511 = vlaneseq
        %v512 = vshrl.u32 %v511, 7
        %v513 = vsub.s32 7, %v512
        %v514 = vrot.slane %v411, %v513
        %v515 = vlaneseq
        %v516 = vshrl.u32 %v515, 7
        %v517 = vsub.s32 0, %v516
        %v518 = vrot.slane %v420, %v517
        %v519 = vlaneseq
        %v520 = vshrl.u32 %v519, 7
        %v521 = vsub.s32 1, %v520
        %v522 = vrot.slane %v420, %v521
        %v523 = vlaneseq
        %v524 = vshrl.u32 %v523, 7
        %v525 = vsub.s32 2, %v524
        %v526 = vrot.slane %v420, %v525
        %v527 = vlaneseq
        %v528 = vshrl.u32 %v527, 7
        %v529 = vsub.s32 3, %v528
        %v530 = vrot.slane %v420, %v529
        %v531 = vlaneseq
        %v532 = vshrl.u32 %v531, 7
        %v533 = vsub.s32 4, %v532
        %v534 = vrot.slane %v420, %v533
        %v535 = vlaneseq
        %v536 = vshrl.u32 %v535, 7
        %v537 = vsub.s32 5, %v536
        %v538 = vrot.slane %v420, %v537
        %v539 = vlaneseq
        %v540 = vshrl.u32 %v539, 7
        %v541 = vsub.s32 6, %v540
        %v542 = vrot.slane %v420, %v541
        %v543 = vlaneseq
        %v544 = vshrl.u32 %v543, 7
        %v545 = vsub.s32 7, %v544
        %v546 = vrot.slane %v420, %v545
        %v547 = vlaneseq
        %v548 = vshrl.u32 %v547, 7
        %v549 = vsub.s32 0, %v548
        %v550 = vrot.slane %v429, %v549
        %v551 = vlaneseq
        %v552 = vshrl.u32 %v551, 7
        %v553 = vsub.s32 1, %v552
        %v554 = vrot.slane %v429, %v553
        %v555 = vlaneseq
        %v556 = vshrl.u32 %v555, 7
        %v557 = vsub.s32 2, %v556
        %v558 = vrot.slane %v429, %v557
        %v559 = vlaneseq
        %v560 = vshrl.u32 %v559, 7
        %v561 = vsub.s32 3, %v560
        %v562 = vrot.slane %v429, %v561
        %v563 = vlaneseq
        %v564 = vshrl.u32 %v563, 7
        %v565 = vsub.s32 4, %v564
        %v566 = vrot.slane %v429, %v565
        %v567 = vlaneseq
        %v568 = vshrl.u32 %v567, 7
        %v569 = vsub.s32 5, %v568
        %v570 = vrot.slane %v429, %v569
        %v571 = vlaneseq
        %v572 = vshrl.u32 %v571, 7
        %v573 = vsub.s32 6, %v572
        %v574 = vrot.slane %v429, %v573
        %v575 = vlaneseq
        %v576 = vshrl.u32 %v575, 7
        %v577 = vsub.s32 7, %v576
        %v578 = vrot.slane %v429, %v577
        %v579 = vlaneseq
        %v580 = vshrl.u32 %v579, 7
        %v581 = vsub.s32 0, %v580
        %v582 = vrot.slane %v438, %v581
        %v583 = vlaneseq
        %v584 = vshrl.u32 %v583, 7
        %v585 = vsub.s32 1, %v584
        %v586 = vrot.slane %v438, %v585
        %v587 = vlaneseq
        %v588 = vshrl.u32 %v587, 7
        %v589 = vsub.s32 2, %v588
        %v590 = vrot.slane %v438, %v589
        %v591 = vlaneseq
        %v592 = vshrl.u32 %v591, 7
        %v593 = vsub.s32 3, %v592
        %v594 = vrot.slane %v438, %v593
        %v595 = vlaneseq
        %v596 = vshrl.u32 %v595, 7
        %v597 = vsub.s32 4, %v596
        %v598 = vrot.slane %v438, %v597
        %v599 = vlaneseq
        %v600 = vshrl.u32 %v599, 7
        %v601 = vsub.s32 5, %v600
        %v602 = vrot.slane %v438, %v601
        %v603 = vlaneseq
        %v604 = vshrl.u32 %v603, 7
        %v605 = vsub.s32 6, %v604
        %v606 = vrot.slane %v438, %v605
        %v607 = vlaneseq
        %v608 = vshrl.u32 %v607, 7
        %v609 = vsub.s32 7, %v608
        %v610 = vrot.slane %v438, %v609
        %v611 = vlaneseq
        %v612 = vshrl.u32 %v611, 7
        %v613 = vsub.s32 0, %v612
        %v614 = vrot.slane %v447, %v613
        %v615 = vlaneseq
        %v616 = vshrl.u32 %v615, 7
        %v617 = vsub.s32 1, %v616
        %v618 = vrot.slane %v447, %v617
        %v619 = vlaneseq
        %v620 = vshrl.u32 %v619, 7
        %v621 = vsub.s32 2, %v620
        %v622 = vrot.slane %v447, %v621
        %v623 = vlaneseq
        %v624 = vshrl.u32 %v623, 7
        %v625 = vsub.s32 3, %v624
        %v626 = vrot.slane %v447, %v625
        %v627 = vlaneseq
        %v628 = vshrl.u32 %v627, 7
        %v629 = vsub.s32 4, %v628
        %v630 = vrot.slane %v447, %v629
        %v631 = vlaneseq
        %v632 = vshrl.u32 %v631, 7
        %v633 = vsub.s32 5, %v632
        %v634 = vrot.slane %v447, %v633
        %v635 = vlaneseq
        %v636 = vshrl.u32 %v635, 7
        %v637 = vsub.s32 6, %v636
        %v638 = vrot.slane %v447, %v637
        %v639 = vlaneseq
        %v640 = vshrl.u32 %v639, 7
        %v641 = vsub.s32 7, %v640
        %v642 = vrot.slane %v447, %v641
        %v643 = vlaneseq
        %v644 = vshrl.u32 %v643, 7
        %v645 = vsub.s32 0, %v644
        %v646 = vrot.slane %v456, %v645
        %v647 = vlaneseq
        %v648 = vshrl.u32 %v647, 7
        %v649 = vsub.s32 1, %v648
        %v650 = vrot.slane %v456, %v649
        %v651 = vlaneseq
        %v652 = vshrl.u32 %v651, 7
        %v653 = vsub.s32 2, %v652
        %v654 = vrot.slane %v456, %v653
        %v655 = vlaneseq
        %v656 = vshrl.u32 %v655, 7
        %v657 = vsub.s32 3, %v656
        %v658 = vrot.slane %v456, %v657
        %v659 = vlaneseq
        %v660 = vshrl.u32 %v659, 7
        %v661 = vsub.s32 4, %v660
        %v662 = vrot.slane %v456, %v661
        %v663 = vlaneseq
        %v664 = vshrl.u32 %v663, 7
        %v665 = vsub.s32 5, %v664
        %v666 = vrot.slane %v456, %v665
        %v667 = vlaneseq
        %v668 = vshrl.u32 %v667, 7
        %v669 = vsub.s32 6, %v668
        %v670 = vrot.slane %v456, %v669
        %v671 = vlaneseq
        %v672 = vshrl.u32 %v671, 7
        %v673 = vsub.s32 7, %v672
        %v674 = vrot.slane %v456, %v673
        %v675 = vlaneseq
        %v676 = vshrl.u32 %v675, 7
        %v677 = vsub.s32 0, %v676
        %v678 = vrot.slane %v465, %v677
        %v679 = vlaneseq
        %v680 = vshrl.u32 %v679, 7
        %v681 = vsub.s32 1, %v680
        %v682 = vrot.slane %v465, %v681
        %v683 = vlaneseq
        %v684 = vshrl.u32 %v683, 7
        %v685 = vsub.s32 2, %v684
        %v686 = vrot.slane %v465, %v685
        %v687 = vlaneseq
        %v688 = vshrl.u32 %v687, 7
        %v689 = vsub.s32 3, %v688
        %v690 = vrot.slane %v465, %v689
        %v691 = vlaneseq
        %v692 = vshrl.u32 %v691, 7
        %v693 = vsub.s32 4, %v692
        %v694 = vrot.slane %v465, %v693
        %v695 = vlaneseq
        %v696 = vshrl.u32 %v695, 7
        %v697 = vsub.s32 5, %v696
        %v698 = vrot.slane %v465, %v697
        %v699 = vlaneseq
        %v700 = vshrl.u32 %v699, 7
        %v701 = vsub.s32 6, %v700
        %v702 = vrot.slane %v465, %v701
        %v703 = vlaneseq
        %v704 = vshrl.u32 %v703, 7
        %v705 = vsub.s32 7, %v704
        %v706 = vrot.slane %v465, %v705
        %v707 = vlaneseq
        %v708 = vshrl.u32 %v707, 7
        %v709 = vsub.s32 0, %v708
        %v710 = vrot.slane %v474, %v709
        %v711 = vlaneseq
        %v712 = vshrl.u32 %v711, 7
        %v713 = vsub.s32 1, %v712
        %v714 = vrot.slane %v474, %v713
        %v715 = vlaneseq
        %v716 = vshrl.u32 %v715, 7
        %v717 = vsub.s32 2, %v716
        %v718 = vrot.slane %v474, %v717
        %v719 = vlaneseq
        %v720 = vshrl.u32 %v719, 7
        %v721 = vsub.s32 3, %v720
        %v722 = vrot.slane %v474, %v721
        %v723 = vlaneseq
        %v724 = vshrl.u32 %v723, 7
        %v725 = vsub.s32 4, %v724
        %v726 = vrot.slane %v474, %v725
        %v727 = vlaneseq
        %v728 = vshrl.u32 %v727, 7
        %v729 = vsub.s32 5, %v728
        %v730 = vrot.slane %v474, %v729
        %v731 = vlaneseq
        %v732 = vshrl.u32 %v731, 7
        %v733 = vsub.s32 6, %v732
        %v734 = vrot.slane %v474, %v733
        %v735 = vlaneseq
        %v736 = vshrl.u32 %v735, 7
        %v737 = vsub.s32 7, %v736
        %v738 = vrot.slane %v474, %v737
        %v739 = vcombine.low %v486, %v490
        %v740 = vcombine.low %v494, %v498
        %v741 = vcombine.low %v502, %v506
        %v742 = vcombine.low %v510, %v514
        %v744 = vunpack.c.l.s4 1966171168
        %v745 = vunpack.c.0.s8 %v744
        %v746 = vlaneseq
        %v747 = vshrl.u32 %v746, 7
        %v748 = vsub.s32 %v745, %v747
        %v749 = vrot.slane %v739, %v748
        %v751 = vunpack.c.l.s4 1966171168
        %v752 = vunpack.c.0.s8 %v751
        %v753 = vlaneseq
        %v754 = vshrl.u32 %v753, 7
        %v755 = vsub.s32 %v752, %v754
        %v756 = vrot.slane %v740, %v755
        %v758 = vunpack.c.l.s4 1966171168
        %v759 = vunpack.c.0.s8 %v758
        %v760 = vlaneseq
        %v761 = vshrl.u32 %v760, 7
        %v762 = vsub.s32 %v759, %v761
        %v763 = vrot.slane %v741, %v762
        %v765 = vunpack.c.l.s4 1966171168
        %v766 = vunpack.c.0.s8 %v765
        %v767 = vlaneseq
        %v768 = vshrl.u32 %v767, 7
        %v769 = vsub.s32 %v766, %v768
        %v770 = vrot.slane %v742, %v769
        %v771 = vcombine.low %v749, %v756
        %v772 = vcombine.low %v763, %v770
        %v774 = vunpack.c.l.s4 1966171168
        %v775 = vunpack.c.0.s8 %v774
        %v776 = vlaneseq
        %v777 = vshrl.u32 %v776, 7
        %v778 = vsub.s32 %v775, %v777
        %v779 = vrot.slane %v771, %v778
        %v781 = vunpack.c.l.s4 1966171168
        %v782 = vunpack.c.0.s8 %v781
        %v783 = vlaneseq
        %v784 = vshrl.u32 %v783, 7
        %v785 = vsub.s32 %v782, %v784
        %v786 = vrot.slane %v772, %v785
        %v787 = vcombine.low %v779, %v786
        %v788 = vcombine.low %v518, %v522
        %v789 = vcombine.low %v526, %v530
        %v790 = vcombine.low %v534, %v538
        %v791 = vcombine.low %v542, %v546
        %v793 = vunpack.c.l.s4 1966171168
        %v794 = vunpack.c.0.s8 %v793
        %v795 = vlaneseq
        %v796 = vshrl.u32 %v795, 7
        %v797 = vsub.s32 %v794, %v796
        %v798 = vrot.slane %v788, %v797
        %v800 = vunpack.c.l.s4 1966171168
        %v801 = vunpack.c.0.s8 %v800
        %v802 = vlaneseq
        %v803 = vshrl.u32 %v802, 7
        %v804 = vsub.s32 %v801, %v803
        %v805 = vrot.slane %v789, %v804
        %v807 = vunpack.c.l.s4 1966171168
        %v808 = vunpack.c.0.s8 %v807
        %v809 = vlaneseq
        %v810 = vshrl.u32 %v809, 7
        %v811 = vsub.s32 %v808, %v810
        %v812 = vrot.slane %v790, %v811
        %v814 = vunpack.c.l.s4 1966171168
        %v815 = vunpack.c.0.s8 %v814
        %v816 = vlaneseq
        %v817 = vshrl.u32 %v816, 7
        %v818 = vsub.s32 %v815, %v817
        %v819 = vrot.slane %v791, %v818
        %v820 = vcombine.low %v798, %v805
        %v821 = vcombine.low %v812, %v819
        %v823 = vunpack.c.l.s4 1966171168
        %v824 = vunpack.c.0.s8 %v823
        %v825 = vlaneseq
        %v826 = vshrl.u32 %v825, 7
        %v827 = vsub.s32 %v824, %v826
        %v828 = vrot.slane %v820, %v827
        %v830 = vunpack.c.l.s4 1966171168
        %v831 = vunpack.c.0.s8 %v830
        %v832 = vlaneseq
        %v833 = vshrl.u32 %v832, 7
        %v834 = vsub.s32 %v831, %v833
        %v835 = vrot.slane %v821, %v834
        %v836 = vcombine.low %v828, %v835
        %v837 = vcombine.low %v550, %v554
        %v838 = vcombine.low %v558, %v562
        %v839 = vcombine.low %v566, %v570
        %v840 = vcombine.low %v574, %v578
        %v842 = vunpack.c.l.s4 1966171168
        %v843 = vunpack.c.0.s8 %v842
        %v844 = vlaneseq
        %v845 = vshrl.u32 %v844, 7
        %v846 = vsub.s32 %v843, %v845
        %v847 = vrot.slane %v837, %v846
        %v849 = vunpack.c.l.s4 1966171168
        %v850 = vunpack.c.0.s8 %v849
        %v851 = vlaneseq
        %v852 = vshrl.u32 %v851, 7
        %v853 = vsub.s32 %v850, %v852
        %v854 = vrot.slane %v838, %v853
        %v856 = vunpack.c.l.s4 1966171168
        %v857 = vunpack.c.0.s8 %v856
        %v858 = vlaneseq
        %v859 = vshrl.u32 %v858, 7
        %v860 = vsub.s32 %v857, %v859
        %v861 = vrot.slane %v839, %v860
        %v863 = vunpack.c.l.s4 1966171168
        %v864 = vunpack.c.0.s8 %v863
        %v865 = vlaneseq
        %v866 = vshrl.u32 %v865, 7
        %v867 = vsub.s32 %v864, %v866
        %v868 = vrot.slane %v840, %v867
        %v869 = vcombine.low %v847, %v854
        %v870 = vcombine.low %v861, %v868
        %v872 = vunpack.c.l.s4 1966171168
        %v873 = vunpack.c.0.s8 %v872
        %v874 = vlaneseq
        %v875 = vshrl.u32 %v874, 7
        %v876 = vsub.s32 %v873, %v875
        %v877 = vrot.slane %v869, %v876
        %v879 = vunpack.c.l.s4 1966171168
        %v880 = vunpack.c.0.s8 %v879
        %v881 = vlaneseq
        %v882 = vshrl.u32 %v881, 7
        %v883 = vsub.s32 %v880, %v882
        %v884 = vrot.slane %v870, %v883
        %v885 = vcombine.low %v877, %v884
        %v886 = vcombine.low %v582, %v586
        %v887 = vcombine.low %v590, %v594
        %v888 = vcombine.low %v598, %v602
        %v889 = vcombine.low %v606, %v610
        %v891 = vunpack.c.l.s4 1966171168
        %v892 = vunpack.c.0.s8 %v891
        %v893 = vlaneseq
        %v894 = vshrl.u32 %v893, 7
        %v895 = vsub.s32 %v892, %v894
        %v896 = vrot.slane %v886, %v895
        %v898 = vunpack.c.l.s4 1966171168
        %v899 = vunpack.c.0.s8 %v898
        %v900 = vlaneseq
        %v901 = vshrl.u32 %v900, 7
        %v902 = vsub.s32 %v899, %v901
        %v903 = vrot.slane %v887, %v902
        %v905 = vunpack.c.l.s4 1966171168
        %v906 = vunpack.c.0.s8 %v905
        %v907 = vlaneseq
        %v908 = vshrl.u32 %v907, 7
        %v909 = vsub.s32 %v906, %v908
        %v910 = vrot.slane %v888, %v909
        %v912 = vunpack.c.l.s4 1966171168
        %v913 = vunpack.c.0.s8 %v912
        %v914 = vlaneseq
        %v915 = vshrl.u32 %v914, 7
        %v916 = vsub.s32 %v913, %v915
        %v917 = vrot.slane %v889, %v916
        %v918 = vcombine.low %v896, %v903
        %v919 = vcombine.low %v910, %v917
        %v921 = vunpack.c.l.s4 1966171168
        %v922 = vunpack.c.0.s8 %v921
        %v923 = vlaneseq
        %v924 = vshrl.u32 %v923, 7
        %v925 = vsub.s32 %v922, %v924
        %v926 = vrot.slane %v918, %v925
        %v928 = vunpack.c.l.s4 1966171168
        %v929 = vunpack.c.0.s8 %v928
        %v930 = vlaneseq
        %v931 = vshrl.u32 %v930, 7
        %v932 = vsub.s32 %v929, %v931
        %v933 = vrot.slane %v919, %v932
        %v934 = vcombine.low %v926, %v933
        %v935 = vcombine.low %v614, %v618
        %v936 = vcombine.low %v622, %v626
        %v937 = vcombine.low %v630, %v634
        %v938 = vcombine.low %v638, %v642
        %v940 = vunpack.c.l.s4 1966171168
        %v941 = vunpack.c.0.s8 %v940
        %v942 = vlaneseq
        %v943 = vshrl.u32 %v942, 7
        %v944 = vsub.s32 %v941, %v943
        %v945 = vrot.slane %v935, %v944
        %v947 = vunpack.c.l.s4 1966171168
        %v948 = vunpack.c.0.s8 %v947
        %v949 = vlaneseq
        %v950 = vshrl.u32 %v949, 7
        %v951 = vsub.s32 %v948, %v950
        %v952 = vrot.slane %v936, %v951
        %v954 = vunpack.c.l.s4 1966171168
        %v955 = vunpack.c.0.s8 %v954
        %v956 = vlaneseq
        %v957 = vshrl.u32 %v956, 7
        %v958 = vsub.s32 %v955, %v957
        %v959 = vrot.slane %v937, %v958
        %v961 = vunpack.c.l.s4 1966171168
        %v962 = vunpack.c.0.s8 %v961
        %v963 = vlaneseq
        %v964 = vshrl.u32 %v963, 7
        %v965 = vsub.s32 %v962, %v964
        %v966 = vrot.slane %v938, %v965
        %v967 = vcombine.low %v945, %v952
        %v968 = vcombine.low %v959, %v966
        %v970 = vunpack.c.l.s4 1966171168
        %v971 = vunpack.c.0.s8 %v970
        %v972 = vlaneseq
        %v973 = vshrl.u32 %v972, 7
        %v974 = vsub.s32 %v971, %v973
        %v975 = vrot.slane %v967, %v974
        %v977 = vunpack.c.l.s4 1966171168
        %v978 = vunpack.c.0.s8 %v977
        %v979 = vlaneseq
        %v980 = vshrl.u32 %v979, 7
        %v981 = vsub.s32 %v978, %v980
        %v982 = vrot.slane %v968, %v981
        %v983 = vcombine.low %v975, %v982
        %v984 = vcombine.low %v646, %v650
        %v985 = vcombine.low %v654, %v658
        %v986 = vcombine.low %v662, %v666
        %v987 = vcombine.low %v670, %v674
        %v989 = vunpack.c.l.s4 1966171168
        %v990 = vunpack.c.0.s8 %v989
        %v991 = vlaneseq
        %v992 = vshrl.u32 %v991, 7
        %v993 = vsub.s32 %v990, %v992
        %v994 = vrot.slane %v984, %v993
        %v996 = vunpack.c.l.s4 1966171168
        %v997 = vunpack.c.0.s8 %v996
        %v998 = vlaneseq
        %v999 = vshrl.u32 %v998, 7
        %v1000 = vsub.s32 %v997, %v999
        %v1001 = vrot.slane %v985, %v1000
        %v1003 = vunpack.c.l.s4 1966171168
        %v1004 = vunpack.c.0.s8 %v1003
        %v1005 = vlaneseq
        %v1006 = vshrl.u32 %v1005, 7
        %v1007 = vsub.s32 %v1004, %v1006
        %v1008 = vrot.slane %v986, %v1007
        %v1010 = vunpack.c.l.s4 1966171168
        %v1011 = vunpack.c.0.s8 %v1010
        %v1012 = vlaneseq
        %v1013 = vshrl.u32 %v1012, 7
        %v1014 = vsub.s32 %v1011, %v1013
        %v1015 = vrot.slane %v987, %v1014
        %v1016 = vcombine.low %v994, %v1001
        %v1017 = vcombine.low %v1008, %v1015
        %v1019 = vunpack.c.l.s4 1966171168
        %v1020 = vunpack.c.0.s8 %v1019
        %v1021 = vlaneseq
        %v1022 = vshrl.u32 %v1021, 7
        %v1023 = vsub.s32 %v1020, %v1022
        %v1024 = vrot.slane %v1016, %v1023
        %v1026 = vunpack.c.l.s4 1966171168
        %v1027 = vunpack.c.0.s8 %v1026
        %v1028 = vlaneseq
        %v1029 = vshrl.u32 %v1028, 7
        %v1030 = vsub.s32 %v1027, %v1029
        %v1031 = vrot.slane %v1017, %v1030
        %v1032 = vcombine.low %v1024, %v1031
        %v1033 = vcombine.low %v678, %v682
        %v1034 = vcombine.low %v686, %v690
        %v1035 = vcombine.low %v694, %v698
        %v1036 = vcombine.low %v702, %v706
        %v1038 = vunpack.c.l.s4 1966171168
        %v1039 = vunpack.c.0.s8 %v1038
        %v1040 = vlaneseq
        %v1041 = vshrl.u32 %v1040, 7
        %v1042 = vsub.s32 %v1039, %v1041
        %v1043 = vrot.slane %v1033, %v1042
        %v1045 = vunpack.c.l.s4 1966171168
        %v1046 = vunpack.c.0.s8 %v1045
        %v1047 = vlaneseq
        %v1048 = vshrl.u32 %v1047, 7
        %v1049 = vsub.s32 %v1046, %v1048
        %v1050 = vrot.slane %v1034, %v1049
        %v1052 = vunpack.c.l.s4 1966171168
        %v1053 = vunpack.c.0.s8 %v1052
        %v1054 = vlaneseq
        %v1055 = vshrl.u32 %v1054, 7
        %v1056 = vsub.s32 %v1053, %v1055
        %v1057 = vrot.slane %v1035, %v1056
        %v1059 = vunpack.c.l.s4 1966171168
        %v1060 = vunpack.c.0.s8 %v1059
        %v1061 = vlaneseq
        %v1062 = vshrl.u32 %v1061, 7
        %v1063 = vsub.s32 %v1060, %v1062
        %v1064 = vrot.slane %v1036, %v1063
        %v1065 = vcombine.low %v1043, %v1050
        %v1066 = vcombine.low %v1057, %v1064
        %v1068 = vunpack.c.l.s4 1966171168
        %v1069 = vunpack.c.0.s8 %v1068
        %v1070 = vlaneseq
        %v1071 = vshrl.u32 %v1070, 7
        %v1072 = vsub.s32 %v1069, %v1071
        %v1073 = vrot.slane %v1065, %v1072
        %v1075 = vunpack.c.l.s4 1966171168
        %v1076 = vunpack.c.0.s8 %v1075
        %v1077 = vlaneseq
        %v1078 = vshrl.u32 %v1077, 7
        %v1079 = vsub.s32 %v1076, %v1078
        %v1080 = vrot.slane %v1066, %v1079
        %v1081 = vcombine.low %v1073, %v1080
        %v1082 = vcombine.low %v710, %v714
        %v1083 = vcombine.low %v718, %v722
        %v1084 = vcombine.low %v726, %v730
        %v1085 = vcombine.low %v734, %v738
        %v1087 = vunpack.c.l.s4 1966171168
        %v1088 = vunpack.c.0.s8 %v1087
        %v1089 = vlaneseq
        %v1090 = vshrl.u32 %v1089, 7
        %v1091 = vsub.s32 %v1088, %v1090
        %v1092 = vrot.slane %v1082, %v1091
        %v1094 = vunpack.c.l.s4 1966171168
        %v1095 = vunpack.c.0.s8 %v1094
        %v1096 = vlaneseq
        %v1097 = vshrl.u32 %v1096, 7
        %v1098 = vsub.s32 %v1095, %v1097
        %v1099 = vrot.slane %v1083, %v1098
        %v1101 = vunpack.c.l.s4 1966171168
        %v1102 = vunpack.c.0.s8 %v1101
        %v1103 = vlaneseq
        %v1104 = vshrl.u32 %v1103, 7
        %v1105 = vsub.s32 %v1102, %v1104
        %v1106 = vrot.slane %v1084, %v1105
        %v1108 = vunpack.c.l.s4 1966171168
        %v1109 = vunpack.c.0.s8 %v1108
        %v1110 = vlaneseq
        %v1111 = vshrl.u32 %v1110, 7
        %v1112 = vsub.s32 %v1109, %v1111
        %v1113 = vrot.slane %v1085, %v1112
        %v1114 = vcombine.low %v1092, %v1099
        %v1115 = vcombine.low %v1106, %v1113
        %v1117 = vunpack.c.l.s4 1966171168
        %v1118 = vunpack.c.0.s8 %v1117
        %v1119 = vlaneseq
        %v1120 = vshrl.u32 %v1119, 7
        %v1121 = vsub.s32 %v1118, %v1120
        %v1122 = vrot.slane %v1114, %v1121
        %v1124 = vunpack.c.l.s4 1966171168
        %v1125 = vunpack.c.0.s8 %v1124
        %v1126 = vlaneseq
        %v1127 = vshrl.u32 %v1126, 7
        %v1128 = vsub.s32 %v1125, %v1127
        %v1129 = vrot.slane %v1115, %v1128
        %v1130 = vcombine.low %v1122, %v1129
        %1131 = vset.pattern.permute.xlu0 0
        %1132 = vperm.xlu0 %1131, %v787
        %v1133 = vpop.permute.xlu0 %1132
        %1134 = vset.pattern.permute.xlu0 0
        %1135 = vperm.xlu0 %1134, %v836
        %v1136 = vpop.permute.xlu0 %1135
        %1137 = vset.pattern.permute.xlu0 0
        %1138 = vperm.xlu0 %1137, %v885
        %v1139 = vpop.permute.xlu0 %1138
        %1140 = vset.pattern.permute.xlu0 0
        %1141 = vperm.xlu0 %1140, %v934
        %v1142 = vpop.permute.xlu0 %1141
        %1143 = vset.pattern.permute.xlu0 0
        %1144 = vperm.xlu0 %1143, %v983
        %v1145 = vpop.permute.xlu0 %1144
        %1146 = vset.pattern.permute.xlu0 0
        %1147 = vperm.xlu0 %1146, %v1032
        %v1148 = vpop.permute.xlu0 %1147
        %1149 = vset.pattern.permute.xlu0 0
        %1150 = vperm.xlu0 %1149, %v1081
        %v1151 = vpop.permute.xlu0 %1150
        %1152 = vset.pattern.permute.xlu0 0
        %1153 = vperm.xlu0 %1152, %v1130
        %v1154 = vpop.permute.xlu0 %1153
        %v1155 = vlaneseq
        %v1156 = vand.u32 %v1155, 127
        %v1157 = vlaneseq
        %v1158 = vshrl.u32 %v1157, 7
        %v1159 = vsub.s32 %v1156, %v1158
        %v1160 = vrot.slane %v1133, %v1159
        %v1161 = vadd.s32 %v1156, 4294967288
        %v1162 = vlaneseq
        %v1163 = vshrl.u32 %v1162, 7
        %v1164 = vsub.s32 %v1161, %v1163
        %v1165 = vrot.slane %v1136, %v1164
        %vm1166 = vcmask 130112
        %v1167 = vsel %vm1166, %v1165, %v1160
        %v1168 = vadd.s32 %v1156, 4294967280
        %v1169 = vlaneseq
        %v1170 = vshrl.u32 %v1169, 7
        %v1171 = vsub.s32 %v1168, %v1170
        %v1172 = vrot.slane %v1139, %v1171
        %vm1173 = vcmask 195712
        %v1174 = vsel %vm1173, %v1172, %v1167
        %v1175 = vadd.s32 %v1156, 4294967272
        %v1176 = vlaneseq
        %v1177 = vshrl.u32 %v1176, 7
        %v1178 = vsub.s32 %v1175, %v1177
        %v1179 = vrot.slane %v1142, %v1178
        %vm1180 = vcmask 261312
        %v1181 = vsel %vm1180, %v1179, %v1174
        %v1182 = vadd.s32 %v1156, 4294967264
        %v1183 = vlaneseq
        %v1184 = vshrl.u32 %v1183, 7
        %v1185 = vsub.s32 %v1182, %v1184
        %v1186 = vrot.slane %v1145, %v1185
        %vm1187 = vcmask 326912
        %v1188 = vsel %vm1187, %v1186, %v1181
        %v1189 = vadd.s32 %v1156, 4294967256
        %v1190 = vlaneseq
        %v1191 = vshrl.u32 %v1190, 7
        %v1192 = vsub.s32 %v1189, %v1191
        %v1193 = vrot.slane %v1148, %v1192
        %vm1194 = vcmask 392512
        %v1195 = vsel %vm1194, %v1193, %v1188
        %v1196 = vadd.s32 %v1156, 4294967248
        %v1197 = vlaneseq
        %v1198 = vshrl.u32 %v1197, 7
        %v1199 = vsub.s32 %v1196, %v1198
        %v1200 = vrot.slane %v1151, %v1199
        %vm1201 = vcmask 458112
        %v1202 = vsel %vm1201, %v1200, %v1195
        %v1203 = vadd.s32 %v1156, 4294967240
        %v1204 = vlaneseq
        %v1205 = vshrl.u32 %v1204, 7
        %v1206 = vsub.s32 %v1203, %v1205
        %v1207 = vrot.slane %v1154, %v1206
        %vm1208 = vcmask 523712
        %v1209 = vsel %vm1208, %v1207, %v1202
        %v1211 = vunpack.c.l.s4 1966171168
        %v1212 = vunpack.c.0.s8 %v1211
        %v1213 = vlaneseq
        %v1214 = vshrl.u32 %v1213, 7
        %v1215 = vsub.s32 %v1212, %v1214
        %v1216 = vrot.slane %v1209, %v1215
        %v1218 = vunpack.c.l.s4 1966171168
        %v1219 = vunpack.c.0.s8 %v1218
        %v1220 = vlaneseq
        %v1221 = vshrl.u32 %v1220, 7
        %v1222 = vsub.s32 %v1219, %v1221
        %v1223 = vrot.slane %v1216, %v1222
        %v1225 = vadd.f32 %v402, %v1223
        %vm1226 = vcmask 516096
        %1227 = vst.msk [vmem:[#allocation2] sm:$0x1] %vm1226, %v1225
        %v1228 = vld [vmem:[#allocation3] sm:$0x1]
        %v1229 = vmax.f32 %v338, %v339
        %v1230 = vmax.f32 %v1229, %v340
        %v1231 = vmax.f32 %v1230, %v341
        %v1232 = vmax.f32 %v1231, %v342
        %v1233 = vmax.f32 %v1232, %v343
        %v1234 = vmax.f32 %v1233, %v344
        %v1235 = vmax.f32 %v1234, %v345
        %1236 = vmax.xlane.f32.xlu0 %v1235
        %v1237 = vpop.xlane.xlu0 %1236
        %v1238 = vmax.f32 %v346, %v347
        %v1239 = vmax.f32 %v1238, %v348
        %v1240 = vmax.f32 %v1239, %v349
        %v1241 = vmax.f32 %v1240, %v350
        %v1242 = vmax.f32 %v1241, %v351
        %v1243 = vmax.f32 %v1242, %v352
        %v1244 = vmax.f32 %v1243, %v353
        %1245 = vmax.xlane.f32.xlu0 %v1244
        %v1246 = vpop.xlane.xlu0 %1245
        %v1247 = vmax.f32 %v354, %v355
        %v1248 = vmax.f32 %v1247, %v356
        %v1249 = vmax.f32 %v1248, %v357
        %v1250 = vmax.f32 %v1249, %v358
        %v1251 = vmax.f32 %v1250, %v359
        %v1252 = vmax.f32 %v1251, %v360
        %v1253 = vmax.f32 %v1252, %v361
        %1254 = vmax.xlane.f32.xlu0 %v1253
        %v1255 = vpop.xlane.xlu0 %1254
        %v1256 = vmax.f32 %v362, %v363
        %v1257 = vmax.f32 %v1256, %v364
        %v1258 = vmax.f32 %v1257, %v365
        %v1259 = vmax.f32 %v1258, %v366
        %v1260 = vmax.f32 %v1259, %v367
        %v1261 = vmax.f32 %v1260, %v368
        %v1262 = vmax.f32 %v1261, %v369
        %1263 = vmax.xlane.f32.xlu0 %v1262
        %v1264 = vpop.xlane.xlu0 %1263
        %v1265 = vmax.f32 %v370, %v371
        %v1266 = vmax.f32 %v1265, %v372
        %v1267 = vmax.f32 %v1266, %v373
        %v1268 = vmax.f32 %v1267, %v374
        %v1269 = vmax.f32 %v1268, %v375
        %v1270 = vmax.f32 %v1269, %v376
        %v1271 = vmax.f32 %v1270, %v377
        %1272 = vmax.xlane.f32.xlu0 %v1271
        %v1273 = vpop.xlane.xlu0 %1272
        %v1274 = vmax.f32 %v378, %v379
        %v1275 = vmax.f32 %v1274, %v380
        %v1276 = vmax.f32 %v1275, %v381
        %v1277 = vmax.f32 %v1276, %v382
        %v1278 = vmax.f32 %v1277, %v383
        %v1279 = vmax.f32 %v1278, %v384
        %v1280 = vmax.f32 %v1279, %v385
        %1281 = vmax.xlane.f32.xlu0 %v1280
        %v1282 = vpop.xlane.xlu0 %1281
        %v1283 = vmax.f32 %v386, %v387
        %v1284 = vmax.f32 %v1283, %v388
        %v1285 = vmax.f32 %v1284, %v389
        %v1286 = vmax.f32 %v1285, %v390
        %v1287 = vmax.f32 %v1286, %v391
        %v1288 = vmax.f32 %v1287, %v392
        %v1289 = vmax.f32 %v1288, %v393
        %1290 = vmax.xlane.f32.xlu0 %v1289
        %v1291 = vpop.xlane.xlu0 %1290
        %v1292 = vmax.f32 %v394, %v395
        %v1293 = vmax.f32 %v1292, %v396
        %v1294 = vmax.f32 %v1293, %v397
        %v1295 = vmax.f32 %v1294, %v398
        %v1296 = vmax.f32 %v1295, %v399
        %v1297 = vmax.f32 %v1296, %v400
        %v1298 = vmax.f32 %v1297, %v401
        %1299 = vmax.xlane.f32.xlu0 %v1298
        %v1300 = vpop.xlane.xlu0 %1299
        %v1309 = vlaneseq
        %v1310 = vshrl.u32 %v1309, 7
        %v1311 = vsub.s32 0, %v1310
        %v1312 = vrot.slane %v1237, %v1311
        %v1313 = vlaneseq
        %v1314 = vshrl.u32 %v1313, 7
        %v1315 = vsub.s32 1, %v1314
        %v1316 = vrot.slane %v1237, %v1315
        %v1317 = vlaneseq
        %v1318 = vshrl.u32 %v1317, 7
        %v1319 = vsub.s32 2, %v1318
        %v1320 = vrot.slane %v1237, %v1319
        %v1321 = vlaneseq
        %v1322 = vshrl.u32 %v1321, 7
        %v1323 = vsub.s32 3, %v1322
        %v1324 = vrot.slane %v1237, %v1323
        %v1325 = vlaneseq
        %v1326 = vshrl.u32 %v1325, 7
        %v1327 = vsub.s32 4, %v1326
        %v1328 = vrot.slane %v1237, %v1327
        %v1329 = vlaneseq
        %v1330 = vshrl.u32 %v1329, 7
        %v1331 = vsub.s32 5, %v1330
        %v1332 = vrot.slane %v1237, %v1331
        %v1333 = vlaneseq
        %v1334 = vshrl.u32 %v1333, 7
        %v1335 = vsub.s32 6, %v1334
        %v1336 = vrot.slane %v1237, %v1335
        %v1337 = vlaneseq
        %v1338 = vshrl.u32 %v1337, 7
        %v1339 = vsub.s32 7, %v1338
        %v1340 = vrot.slane %v1237, %v1339
        %v1341 = vlaneseq
        %v1342 = vshrl.u32 %v1341, 7
        %v1343 = vsub.s32 0, %v1342
        %v1344 = vrot.slane %v1246, %v1343
        %v1345 = vlaneseq
        %v1346 = vshrl.u32 %v1345, 7
        %v1347 = vsub.s32 1, %v1346
        %v1348 = vrot.slane %v1246, %v1347
        %v1349 = vlaneseq
        %v1350 = vshrl.u32 %v1349, 7
        %v1351 = vsub.s32 2, %v1350
        %v1352 = vrot.slane %v1246, %v1351
        %v1353 = vlaneseq
        %v1354 = vshrl.u32 %v1353, 7
        %v1355 = vsub.s32 3, %v1354
        %v1356 = vrot.slane %v1246, %v1355
        %v1357 = vlaneseq
        %v1358 = vshrl.u32 %v1357, 7
        %v1359 = vsub.s32 4, %v1358
        %v1360 = vrot.slane %v1246, %v1359
        %v1361 = vlaneseq
        %v1362 = vshrl.u32 %v1361, 7
        %v1363 = vsub.s32 5, %v1362
        %v1364 = vrot.slane %v1246, %v1363
        %v1365 = vlaneseq
        %v1366 = vshrl.u32 %v1365, 7
        %v1367 = vsub.s32 6, %v1366
        %v1368 = vrot.slane %v1246, %v1367
        %v1369 = vlaneseq
        %v1370 = vshrl.u32 %v1369, 7
        %v1371 = vsub.s32 7, %v1370
        %v1372 = vrot.slane %v1246, %v1371
        %v1373 = vlaneseq
        %v1374 = vshrl.u32 %v1373, 7
        %v1375 = vsub.s32 0, %v1374
        %v1376 = vrot.slane %v1255, %v1375
        %v1377 = vlaneseq
        %v1378 = vshrl.u32 %v1377, 7
        %v1379 = vsub.s32 1, %v1378
        %v1380 = vrot.slane %v1255, %v1379
        %v1381 = vlaneseq
        %v1382 = vshrl.u32 %v1381, 7
        %v1383 = vsub.s32 2, %v1382
        %v1384 = vrot.slane %v1255, %v1383
        %v1385 = vlaneseq
        %v1386 = vshrl.u32 %v1385, 7
        %v1387 = vsub.s32 3, %v1386
        %v1388 = vrot.slane %v1255, %v1387
        %v1389 = vlaneseq
        %v1390 = vshrl.u32 %v1389, 7
        %v1391 = vsub.s32 4, %v1390
        %v1392 = vrot.slane %v1255, %v1391
        %v1393 = vlaneseq
        %v1394 = vshrl.u32 %v1393, 7
        %v1395 = vsub.s32 5, %v1394
        %v1396 = vrot.slane %v1255, %v1395
        %v1397 = vlaneseq
        %v1398 = vshrl.u32 %v1397, 7
        %v1399 = vsub.s32 6, %v1398
        %v1400 = vrot.slane %v1255, %v1399
        %v1401 = vlaneseq
        %v1402 = vshrl.u32 %v1401, 7
        %v1403 = vsub.s32 7, %v1402
        %v1404 = vrot.slane %v1255, %v1403
        %v1405 = vlaneseq
        %v1406 = vshrl.u32 %v1405, 7
        %v1407 = vsub.s32 0, %v1406
        %v1408 = vrot.slane %v1264, %v1407
        %v1409 = vlaneseq
        %v1410 = vshrl.u32 %v1409, 7
        %v1411 = vsub.s32 1, %v1410
        %v1412 = vrot.slane %v1264, %v1411
        %v1413 = vlaneseq
        %v1414 = vshrl.u32 %v1413, 7
        %v1415 = vsub.s32 2, %v1414
        %v1416 = vrot.slane %v1264, %v1415
        %v1417 = vlaneseq
        %v1418 = vshrl.u32 %v1417, 7
        %v1419 = vsub.s32 3, %v1418
        %v1420 = vrot.slane %v1264, %v1419
        %v1421 = vlaneseq
        %v1422 = vshrl.u32 %v1421, 7
        %v1423 = vsub.s32 4, %v1422
        %v1424 = vrot.slane %v1264, %v1423
        %v1425 = vlaneseq
        %v1426 = vshrl.u32 %v1425, 7
        %v1427 = vsub.s32 5, %v1426
        %v1428 = vrot.slane %v1264, %v1427
        %v1429 = vlaneseq
        %v1430 = vshrl.u32 %v1429, 7
        %v1431 = vsub.s32 6, %v1430
        %v1432 = vrot.slane %v1264, %v1431
        %v1433 = vlaneseq
        %v1434 = vshrl.u32 %v1433, 7
        %v1435 = vsub.s32 7, %v1434
        %v1436 = vrot.slane %v1264, %v1435
        %v1437 = vlaneseq
        %v1438 = vshrl.u32 %v1437, 7
        %v1439 = vsub.s32 0, %v1438
        %v1440 = vrot.slane %v1273, %v1439
        %v1441 = vlaneseq
        %v1442 = vshrl.u32 %v1441, 7
        %v1443 = vsub.s32 1, %v1442
        %v1444 = vrot.slane %v1273, %v1443
        %v1445 = vlaneseq
        %v1446 = vshrl.u32 %v1445, 7
        %v1447 = vsub.s32 2, %v1446
        %v1448 = vrot.slane %v1273, %v1447
        %v1449 = vlaneseq
        %v1450 = vshrl.u32 %v1449, 7
        %v1451 = vsub.s32 3, %v1450
        %v1452 = vrot.slane %v1273, %v1451
        %v1453 = vlaneseq
        %v1454 = vshrl.u32 %v1453, 7
        %v1455 = vsub.s32 4, %v1454
        %v1456 = vrot.slane %v1273, %v1455
        %v1457 = vlaneseq
        %v1458 = vshrl.u32 %v1457, 7
        %v1459 = vsub.s32 5, %v1458
        %v1460 = vrot.slane %v1273, %v1459
        %v1461 = vlaneseq
        %v1462 = vshrl.u32 %v1461, 7
        %v1463 = vsub.s32 6, %v1462
        %v1464 = vrot.slane %v1273, %v1463
        %v1465 = vlaneseq
        %v1466 = vshrl.u32 %v1465, 7
        %v1467 = vsub.s32 7, %v1466
        %v1468 = vrot.slane %v1273, %v1467
        %v1469 = vlaneseq
        %v1470 = vshrl.u32 %v1469, 7
        %v1471 = vsub.s32 0, %v1470
        %v1472 = vrot.slane %v1282, %v1471
        %v1473 = vlaneseq
        %v1474 = vshrl.u32 %v1473, 7
        %v1475 = vsub.s32 1, %v1474
        %v1476 = vrot.slane %v1282, %v1475
        %v1477 = vlaneseq
        %v1478 = vshrl.u32 %v1477, 7
        %v1479 = vsub.s32 2, %v1478
        %v1480 = vrot.slane %v1282, %v1479
        %v1481 = vlaneseq
        %v1482 = vshrl.u32 %v1481, 7
        %v1483 = vsub.s32 3, %v1482
        %v1484 = vrot.slane %v1282, %v1483
        %v1485 = vlaneseq
        %v1486 = vshrl.u32 %v1485, 7
        %v1487 = vsub.s32 4, %v1486
        %v1488 = vrot.slane %v1282, %v1487
        %v1489 = vlaneseq
        %v1490 = vshrl.u32 %v1489, 7
        %v1491 = vsub.s32 5, %v1490
        %v1492 = vrot.slane %v1282, %v1491
        %v1493 = vlaneseq
        %v1494 = vshrl.u32 %v1493, 7
        %v1495 = vsub.s32 6, %v1494
        %v1496 = vrot.slane %v1282, %v1495
        %v1497 = vlaneseq
        %v1498 = vshrl.u32 %v1497, 7
        %v1499 = vsub.s32 7, %v1498
        %v1500 = vrot.slane %v1282, %v1499
        %v1501 = vlaneseq
        %v1502 = vshrl.u32 %v1501, 7
        %v1503 = vsub.s32 0, %v1502
        %v1504 = vrot.slane %v1291, %v1503
        %v1505 = vlaneseq
        %v1506 = vshrl.u32 %v1505, 7
        %v1507 = vsub.s32 1, %v1506
        %v1508 = vrot.slane %v1291, %v1507
        %v1509 = vlaneseq
        %v1510 = vshrl.u32 %v1509, 7
        %v1511 = vsub.s32 2, %v1510
        %v1512 = vrot.slane %v1291, %v1511
        %v1513 = vlaneseq
        %v1514 = vshrl.u32 %v1513, 7
        %v1515 = vsub.s32 3, %v1514
        %v1516 = vrot.slane %v1291, %v1515
        %v1517 = vlaneseq
        %v1518 = vshrl.u32 %v1517, 7
        %v1519 = vsub.s32 4, %v1518
        %v1520 = vrot.slane %v1291, %v1519
        %v1521 = vlaneseq
        %v1522 = vshrl.u32 %v1521, 7
        %v1523 = vsub.s32 5, %v1522
        %v1524 = vrot.slane %v1291, %v1523
        %v1525 = vlaneseq
        %v1526 = vshrl.u32 %v1525, 7
        %v1527 = vsub.s32 6, %v1526
        %v1528 = vrot.slane %v1291, %v1527
        %v1529 = vlaneseq
        %v1530 = vshrl.u32 %v1529, 7
        %v1531 = vsub.s32 7, %v1530
        %v1532 = vrot.slane %v1291, %v1531
        %v1533 = vlaneseq
        %v1534 = vshrl.u32 %v1533, 7
        %v1535 = vsub.s32 0, %v1534
        %v1536 = vrot.slane %v1300, %v1535
        %v1537 = vlaneseq
        %v1538 = vshrl.u32 %v1537, 7
        %v1539 = vsub.s32 1, %v1538
        %v1540 = vrot.slane %v1300, %v1539
        %v1541 = vlaneseq
        %v1542 = vshrl.u32 %v1541, 7
        %v1543 = vsub.s32 2, %v1542
        %v1544 = vrot.slane %v1300, %v1543
        %v1545 = vlaneseq
        %v1546 = vshrl.u32 %v1545, 7
        %v1547 = vsub.s32 3, %v1546
        %v1548 = vrot.slane %v1300, %v1547
        %v1549 = vlaneseq
        %v1550 = vshrl.u32 %v1549, 7
        %v1551 = vsub.s32 4, %v1550
        %v1552 = vrot.slane %v1300, %v1551
        %v1553 = vlaneseq
        %v1554 = vshrl.u32 %v1553, 7
        %v1555 = vsub.s32 5, %v1554
        %v1556 = vrot.slane %v1300, %v1555
        %v1557 = vlaneseq
        %v1558 = vshrl.u32 %v1557, 7
        %v1559 = vsub.s32 6, %v1558
        %v1560 = vrot.slane %v1300, %v1559
        %v1561 = vlaneseq
        %v1562 = vshrl.u32 %v1561, 7
        %v1563 = vsub.s32 7, %v1562
        %v1564 = vrot.slane %v1300, %v1563
        %v1565 = vcombine.low %v1312, %v1316
        %v1566 = vcombine.low %v1320, %v1324
        %v1567 = vcombine.low %v1328, %v1332
        %v1568 = vcombine.low %v1336, %v1340
        %v1570 = vunpack.c.l.s4 1966171168
        %v1571 = vunpack.c.0.s8 %v1570
        %v1572 = vlaneseq
        %v1573 = vshrl.u32 %v1572, 7
        %v1574 = vsub.s32 %v1571, %v1573
        %v1575 = vrot.slane %v1565, %v1574
        %v1577 = vunpack.c.l.s4 1966171168
        %v1578 = vunpack.c.0.s8 %v1577
        %v1579 = vlaneseq
        %v1580 = vshrl.u32 %v1579, 7
        %v1581 = vsub.s32 %v1578, %v1580
        %v1582 = vrot.slane %v1566, %v1581
        %v1584 = vunpack.c.l.s4 1966171168
        %v1585 = vunpack.c.0.s8 %v1584
        %v1586 = vlaneseq
        %v1587 = vshrl.u32 %v1586, 7
        %v1588 = vsub.s32 %v1585, %v1587
        %v1589 = vrot.slane %v1567, %v1588
        %v1591 = vunpack.c.l.s4 1966171168
        %v1592 = vunpack.c.0.s8 %v1591
        %v1593 = vlaneseq
        %v1594 = vshrl.u32 %v1593, 7
        %v1595 = vsub.s32 %v1592, %v1594
        %v1596 = vrot.slane %v1568, %v1595
        %v1597 = vcombine.low %v1575, %v1582
        %v1598 = vcombine.low %v1589, %v1596
        %v1600 = vunpack.c.l.s4 1966171168
        %v1601 = vunpack.c.0.s8 %v1600
        %v1602 = vlaneseq
        %v1603 = vshrl.u32 %v1602, 7
        %v1604 = vsub.s32 %v1601, %v1603
        %v1605 = vrot.slane %v1597, %v1604
        %v1607 = vunpack.c.l.s4 1966171168
        %v1608 = vunpack.c.0.s8 %v1607
        %v1609 = vlaneseq
        %v1610 = vshrl.u32 %v1609, 7
        %v1611 = vsub.s32 %v1608, %v1610
        %v1612 = vrot.slane %v1598, %v1611
        %v1613 = vcombine.low %v1605, %v1612
        %v1614 = vcombine.low %v1344, %v1348
        %v1615 = vcombine.low %v1352, %v1356
        %v1616 = vcombine.low %v1360, %v1364
        %v1617 = vcombine.low %v1368, %v1372
        %v1619 = vunpack.c.l.s4 1966171168
        %v1620 = vunpack.c.0.s8 %v1619
        %v1621 = vlaneseq
        %v1622 = vshrl.u32 %v1621, 7
        %v1623 = vsub.s32 %v1620, %v1622
        %v1624 = vrot.slane %v1614, %v1623
        %v1626 = vunpack.c.l.s4 1966171168
        %v1627 = vunpack.c.0.s8 %v1626
        %v1628 = vlaneseq
        %v1629 = vshrl.u32 %v1628, 7
        %v1630 = vsub.s32 %v1627, %v1629
        %v1631 = vrot.slane %v1615, %v1630
        %v1633 = vunpack.c.l.s4 1966171168
        %v1634 = vunpack.c.0.s8 %v1633
        %v1635 = vlaneseq
        %v1636 = vshrl.u32 %v1635, 7
        %v1637 = vsub.s32 %v1634, %v1636
        %v1638 = vrot.slane %v1616, %v1637
        %v1640 = vunpack.c.l.s4 1966171168
        %v1641 = vunpack.c.0.s8 %v1640
        %v1642 = vlaneseq
        %v1643 = vshrl.u32 %v1642, 7
        %v1644 = vsub.s32 %v1641, %v1643
        %v1645 = vrot.slane %v1617, %v1644
        %v1646 = vcombine.low %v1624, %v1631
        %v1647 = vcombine.low %v1638, %v1645
        %v1649 = vunpack.c.l.s4 1966171168
        %v1650 = vunpack.c.0.s8 %v1649
        %v1651 = vlaneseq
        %v1652 = vshrl.u32 %v1651, 7
        %v1653 = vsub.s32 %v1650, %v1652
        %v1654 = vrot.slane %v1646, %v1653
        %v1656 = vunpack.c.l.s4 1966171168
        %v1657 = vunpack.c.0.s8 %v1656
        %v1658 = vlaneseq
        %v1659 = vshrl.u32 %v1658, 7
        %v1660 = vsub.s32 %v1657, %v1659
        %v1661 = vrot.slane %v1647, %v1660
        %v1662 = vcombine.low %v1654, %v1661
        %v1663 = vcombine.low %v1376, %v1380
        %v1664 = vcombine.low %v1384, %v1388
        %v1665 = vcombine.low %v1392, %v1396
        %v1666 = vcombine.low %v1400, %v1404
        %v1668 = vunpack.c.l.s4 1966171168
        %v1669 = vunpack.c.0.s8 %v1668
        %v1670 = vlaneseq
        %v1671 = vshrl.u32 %v1670, 7
        %v1672 = vsub.s32 %v1669, %v1671
        %v1673 = vrot.slane %v1663, %v1672
        %v1675 = vunpack.c.l.s4 1966171168
        %v1676 = vunpack.c.0.s8 %v1675
        %v1677 = vlaneseq
        %v1678 = vshrl.u32 %v1677, 7
        %v1679 = vsub.s32 %v1676, %v1678
        %v1680 = vrot.slane %v1664, %v1679
        %v1682 = vunpack.c.l.s4 1966171168
        %v1683 = vunpack.c.0.s8 %v1682
        %v1684 = vlaneseq
        %v1685 = vshrl.u32 %v1684, 7
        %v1686 = vsub.s32 %v1683, %v1685
        %v1687 = vrot.slane %v1665, %v1686
        %v1689 = vunpack.c.l.s4 1966171168
        %v1690 = vunpack.c.0.s8 %v1689
        %v1691 = vlaneseq
        %v1692 = vshrl.u32 %v1691, 7
        %v1693 = vsub.s32 %v1690, %v1692
        %v1694 = vrot.slane %v1666, %v1693
        %v1695 = vcombine.low %v1673, %v1680
        %v1696 = vcombine.low %v1687, %v1694
        %v1698 = vunpack.c.l.s4 1966171168
        %v1699 = vunpack.c.0.s8 %v1698
        %v1700 = vlaneseq
        %v1701 = vshrl.u32 %v1700, 7
        %v1702 = vsub.s32 %v1699, %v1701
        %v1703 = vrot.slane %v1695, %v1702
        %v1705 = vunpack.c.l.s4 1966171168
        %v1706 = vunpack.c.0.s8 %v1705
        %v1707 = vlaneseq
        %v1708 = vshrl.u32 %v1707, 7
        %v1709 = vsub.s32 %v1706, %v1708
        %v1710 = vrot.slane %v1696, %v1709
        %v1711 = vcombine.low %v1703, %v1710
        %v1712 = vcombine.low %v1408, %v1412
        %v1713 = vcombine.low %v1416, %v1420
        %v1714 = vcombine.low %v1424, %v1428
        %v1715 = vcombine.low %v1432, %v1436
        %v1717 = vunpack.c.l.s4 1966171168
        %v1718 = vunpack.c.0.s8 %v1717
        %v1719 = vlaneseq
        %v1720 = vshrl.u32 %v1719, 7
        %v1721 = vsub.s32 %v1718, %v1720
        %v1722 = vrot.slane %v1712, %v1721
        %v1724 = vunpack.c.l.s4 1966171168
        %v1725 = vunpack.c.0.s8 %v1724
        %v1726 = vlaneseq
        %v1727 = vshrl.u32 %v1726, 7
        %v1728 = vsub.s32 %v1725, %v1727
        %v1729 = vrot.slane %v1713, %v1728
        %v1731 = vunpack.c.l.s4 1966171168
        %v1732 = vunpack.c.0.s8 %v1731
        %v1733 = vlaneseq
        %v1734 = vshrl.u32 %v1733, 7
        %v1735 = vsub.s32 %v1732, %v1734
        %v1736 = vrot.slane %v1714, %v1735
        %v1738 = vunpack.c.l.s4 1966171168
        %v1739 = vunpack.c.0.s8 %v1738
        %v1740 = vlaneseq
        %v1741 = vshrl.u32 %v1740, 7
        %v1742 = vsub.s32 %v1739, %v1741
        %v1743 = vrot.slane %v1715, %v1742
        %v1744 = vcombine.low %v1722, %v1729
        %v1745 = vcombine.low %v1736, %v1743
        %v1747 = vunpack.c.l.s4 1966171168
        %v1748 = vunpack.c.0.s8 %v1747
        %v1749 = vlaneseq
        %v1750 = vshrl.u32 %v1749, 7
        %v1751 = vsub.s32 %v1748, %v1750
        %v1752 = vrot.slane %v1744, %v1751
        %v1754 = vunpack.c.l.s4 1966171168
        %v1755 = vunpack.c.0.s8 %v1754
        %v1756 = vlaneseq
        %v1757 = vshrl.u32 %v1756, 7
        %v1758 = vsub.s32 %v1755, %v1757
        %v1759 = vrot.slane %v1745, %v1758
        %v1760 = vcombine.low %v1752, %v1759
        %v1761 = vcombine.low %v1440, %v1444
        %v1762 = vcombine.low %v1448, %v1452
        %v1763 = vcombine.low %v1456, %v1460
        %v1764 = vcombine.low %v1464, %v1468
        %v1766 = vunpack.c.l.s4 1966171168
        %v1767 = vunpack.c.0.s8 %v1766
        %v1768 = vlaneseq
        %v1769 = vshrl.u32 %v1768, 7
        %v1770 = vsub.s32 %v1767, %v1769
        %v1771 = vrot.slane %v1761, %v1770
        %v1773 = vunpack.c.l.s4 1966171168
        %v1774 = vunpack.c.0.s8 %v1773
        %v1775 = vlaneseq
        %v1776 = vshrl.u32 %v1775, 7
        %v1777 = vsub.s32 %v1774, %v1776
        %v1778 = vrot.slane %v1762, %v1777
        %v1780 = vunpack.c.l.s4 1966171168
        %v1781 = vunpack.c.0.s8 %v1780
        %v1782 = vlaneseq
        %v1783 = vshrl.u32 %v1782, 7
        %v1784 = vsub.s32 %v1781, %v1783
        %v1785 = vrot.slane %v1763, %v1784
        %v1787 = vunpack.c.l.s4 1966171168
        %v1788 = vunpack.c.0.s8 %v1787
        %v1789 = vlaneseq
        %v1790 = vshrl.u32 %v1789, 7
        %v1791 = vsub.s32 %v1788, %v1790
        %v1792 = vrot.slane %v1764, %v1791
        %v1793 = vcombine.low %v1771, %v1778
        %v1794 = vcombine.low %v1785, %v1792
        %v1796 = vunpack.c.l.s4 1966171168
        %v1797 = vunpack.c.0.s8 %v1796
        %v1798 = vlaneseq
        %v1799 = vshrl.u32 %v1798, 7
        %v1800 = vsub.s32 %v1797, %v1799
        %v1801 = vrot.slane %v1793, %v1800
        %v1803 = vunpack.c.l.s4 1966171168
        %v1804 = vunpack.c.0.s8 %v1803
        %v1805 = vlaneseq
        %v1806 = vshrl.u32 %v1805, 7
        %v1807 = vsub.s32 %v1804, %v1806
        %v1808 = vrot.slane %v1794, %v1807
        %v1809 = vcombine.low %v1801, %v1808
        %v1810 = vcombine.low %v1472, %v1476
        %v1811 = vcombine.low %v1480, %v1484
        %v1812 = vcombine.low %v1488, %v1492
        %v1813 = vcombine.low %v1496, %v1500
        %v1815 = vunpack.c.l.s4 1966171168
        %v1816 = vunpack.c.0.s8 %v1815
        %v1817 = vlaneseq
        %v1818 = vshrl.u32 %v1817, 7
        %v1819 = vsub.s32 %v1816, %v1818
        %v1820 = vrot.slane %v1810, %v1819
        %v1822 = vunpack.c.l.s4 1966171168
        %v1823 = vunpack.c.0.s8 %v1822
        %v1824 = vlaneseq
        %v1825 = vshrl.u32 %v1824, 7
        %v1826 = vsub.s32 %v1823, %v1825
        %v1827 = vrot.slane %v1811, %v1826
        %v1829 = vunpack.c.l.s4 1966171168
        %v1830 = vunpack.c.0.s8 %v1829
        %v1831 = vlaneseq
        %v1832 = vshrl.u32 %v1831, 7
        %v1833 = vsub.s32 %v1830, %v1832
        %v1834 = vrot.slane %v1812, %v1833
        %v1836 = vunpack.c.l.s4 1966171168
        %v1837 = vunpack.c.0.s8 %v1836
        %v1838 = vlaneseq
        %v1839 = vshrl.u32 %v1838, 7
        %v1840 = vsub.s32 %v1837, %v1839
        %v1841 = vrot.slane %v1813, %v1840
        %v1842 = vcombine.low %v1820, %v1827
        %v1843 = vcombine.low %v1834, %v1841
        %v1845 = vunpack.c.l.s4 1966171168
        %v1846 = vunpack.c.0.s8 %v1845
        %v1847 = vlaneseq
        %v1848 = vshrl.u32 %v1847, 7
        %v1849 = vsub.s32 %v1846, %v1848
        %v1850 = vrot.slane %v1842, %v1849
        %v1852 = vunpack.c.l.s4 1966171168
        %v1853 = vunpack.c.0.s8 %v1852
        %v1854 = vlaneseq
        %v1855 = vshrl.u32 %v1854, 7
        %v1856 = vsub.s32 %v1853, %v1855
        %v1857 = vrot.slane %v1843, %v1856
        %v1858 = vcombine.low %v1850, %v1857
        %v1859 = vcombine.low %v1504, %v1508
        %v1860 = vcombine.low %v1512, %v1516
        %v1861 = vcombine.low %v1520, %v1524
        %v1862 = vcombine.low %v1528, %v1532
        %v1864 = vunpack.c.l.s4 1966171168
        %v1865 = vunpack.c.0.s8 %v1864
        %v1866 = vlaneseq
        %v1867 = vshrl.u32 %v1866, 7
        %v1868 = vsub.s32 %v1865, %v1867
        %v1869 = vrot.slane %v1859, %v1868
        %v1871 = vunpack.c.l.s4 1966171168
        %v1872 = vunpack.c.0.s8 %v1871
        %v1873 = vlaneseq
        %v1874 = vshrl.u32 %v1873, 7
        %v1875 = vsub.s32 %v1872, %v1874
        %v1876 = vrot.slane %v1860, %v1875
        %v1878 = vunpack.c.l.s4 1966171168
        %v1879 = vunpack.c.0.s8 %v1878
        %v1880 = vlaneseq
        %v1881 = vshrl.u32 %v1880, 7
        %v1882 = vsub.s32 %v1879, %v1881
        %v1883 = vrot.slane %v1861, %v1882
        %v1885 = vunpack.c.l.s4 1966171168
        %v1886 = vunpack.c.0.s8 %v1885
        %v1887 = vlaneseq
        %v1888 = vshrl.u32 %v1887, 7
        %v1889 = vsub.s32 %v1886, %v1888
        %v1890 = vrot.slane %v1862, %v1889
        %v1891 = vcombine.low %v1869, %v1876
        %v1892 = vcombine.low %v1883, %v1890
        %v1894 = vunpack.c.l.s4 1966171168
        %v1895 = vunpack.c.0.s8 %v1894
        %v1896 = vlaneseq
        %v1897 = vshrl.u32 %v1896, 7
        %v1898 = vsub.s32 %v1895, %v1897
        %v1899 = vrot.slane %v1891, %v1898
        %v1901 = vunpack.c.l.s4 1966171168
        %v1902 = vunpack.c.0.s8 %v1901
        %v1903 = vlaneseq
        %v1904 = vshrl.u32 %v1903, 7
        %v1905 = vsub.s32 %v1902, %v1904
        %v1906 = vrot.slane %v1892, %v1905
        %v1907 = vcombine.low %v1899, %v1906
        %v1908 = vcombine.low %v1536, %v1540
        %v1909 = vcombine.low %v1544, %v1548
        %v1910 = vcombine.low %v1552, %v1556
        %v1911 = vcombine.low %v1560, %v1564
        %v1913 = vunpack.c.l.s4 1966171168
        %v1914 = vunpack.c.0.s8 %v1913
        %v1915 = vlaneseq
        %v1916 = vshrl.u32 %v1915, 7
        %v1917 = vsub.s32 %v1914, %v1916
        %v1918 = vrot.slane %v1908, %v1917
        %v1920 = vunpack.c.l.s4 1966171168
        %v1921 = vunpack.c.0.s8 %v1920
        %v1922 = vlaneseq
        %v1923 = vshrl.u32 %v1922, 7
        %v1924 = vsub.s32 %v1921, %v1923
        %v1925 = vrot.slane %v1909, %v1924
        %v1927 = vunpack.c.l.s4 1966171168
        %v1928 = vunpack.c.0.s8 %v1927
        %v1929 = vlaneseq
        %v1930 = vshrl.u32 %v1929, 7
        %v1931 = vsub.s32 %v1928, %v1930
        %v1932 = vrot.slane %v1910, %v1931
        %v1934 = vunpack.c.l.s4 1966171168
        %v1935 = vunpack.c.0.s8 %v1934
        %v1936 = vlaneseq
        %v1937 = vshrl.u32 %v1936, 7
        %v1938 = vsub.s32 %v1935, %v1937
        %v1939 = vrot.slane %v1911, %v1938
        %v1940 = vcombine.low %v1918, %v1925
        %v1941 = vcombine.low %v1932, %v1939
        %v1943 = vunpack.c.l.s4 1966171168
        %v1944 = vunpack.c.0.s8 %v1943
        %v1945 = vlaneseq
        %v1946 = vshrl.u32 %v1945, 7
        %v1947 = vsub.s32 %v1944, %v1946
        %v1948 = vrot.slane %v1940, %v1947
        %v1950 = vunpack.c.l.s4 1966171168
        %v1951 = vunpack.c.0.s8 %v1950
        %v1952 = vlaneseq
        %v1953 = vshrl.u32 %v1952, 7
        %v1954 = vsub.s32 %v1951, %v1953
        %v1955 = vrot.slane %v1941, %v1954
        %v1956 = vcombine.low %v1948, %v1955
        %1957 = vset.pattern.permute.xlu0 0
        %1958 = vperm.xlu0 %1957, %v1613
        %v1959 = vpop.permute.xlu0 %1958
        %1960 = vset.pattern.permute.xlu0 0
        %1961 = vperm.xlu0 %1960, %v1662
        %v1962 = vpop.permute.xlu0 %1961
        %1963 = vset.pattern.permute.xlu0 0
        %1964 = vperm.xlu0 %1963, %v1711
        %v1965 = vpop.permute.xlu0 %1964
        %1966 = vset.pattern.permute.xlu0 0
        %1967 = vperm.xlu0 %1966, %v1760
        %v1968 = vpop.permute.xlu0 %1967
        %1969 = vset.pattern.permute.xlu0 0
        %1970 = vperm.xlu0 %1969, %v1809
        %v1971 = vpop.permute.xlu0 %1970
        %1972 = vset.pattern.permute.xlu0 0
        %1973 = vperm.xlu0 %1972, %v1858
        %v1974 = vpop.permute.xlu0 %1973
        %1975 = vset.pattern.permute.xlu0 0
        %1976 = vperm.xlu0 %1975, %v1907
        %v1977 = vpop.permute.xlu0 %1976
        %1978 = vset.pattern.permute.xlu0 0
        %1979 = vperm.xlu0 %1978, %v1956
        %v1980 = vpop.permute.xlu0 %1979
        %v1981 = vlaneseq
        %v1982 = vshrl.u32 %v1981, 7
        %v1983 = vsub.s32 %v1156, %v1982
        %v1984 = vrot.slane %v1959, %v1983
        %v1985 = vlaneseq
        %v1986 = vshrl.u32 %v1985, 7
        %v1987 = vsub.s32 %v1161, %v1986
        %v1988 = vrot.slane %v1962, %v1987
        %v1989 = vsel %vm1166, %v1988, %v1984
        %v1990 = vlaneseq
        %v1991 = vshrl.u32 %v1990, 7
        %v1992 = vsub.s32 %v1168, %v1991
        %v1993 = vrot.slane %v1965, %v1992
        %v1994 = vsel %vm1173, %v1993, %v1989
        %v1995 = vlaneseq
        %v1996 = vshrl.u32 %v1995, 7
        %v1997 = vsub.s32 %v1175, %v1996
        %v1998 = vrot.slane %v1968, %v1997
        %v1999 = vsel %vm1180, %v1998, %v1994
        %v2000 = vlaneseq
        %v2001 = vshrl.u32 %v2000, 7
        %v2002 = vsub.s32 %v1182, %v2001
        %v2003 = vrot.slane %v1971, %v2002
        %v2004 = vsel %vm1187, %v2003, %v1999
        %v2005 = vlaneseq
        %v2006 = vshrl.u32 %v2005, 7
        %v2007 = vsub.s32 %v1189, %v2006
        %v2008 = vrot.slane %v1974, %v2007
        %v2009 = vsel %vm1194, %v2008, %v2004
        %v2010 = vlaneseq
        %v2011 = vshrl.u32 %v2010, 7
        %v2012 = vsub.s32 %v1196, %v2011
        %v2013 = vrot.slane %v1977, %v2012
        %v2014 = vsel %vm1201, %v2013, %v2009
        %v2015 = vlaneseq
        %v2016 = vshrl.u32 %v2015, 7
        %v2017 = vsub.s32 %v1203, %v2016
        %v2018 = vrot.slane %v1980, %v2017
        %v2019 = vsel %vm1208, %v2018, %v2014
        %v2021 = vunpack.c.l.s4 1966171168
        %v2022 = vunpack.c.0.s8 %v2021
        %v2023 = vlaneseq
        %v2024 = vshrl.u32 %v2023, 7
        %v2025 = vsub.s32 %v2022, %v2024
        %v2026 = vrot.slane %v2019, %v2025
        %v2028 = vunpack.c.l.s4 1966171168
        %v2029 = vunpack.c.0.s8 %v2028
        %v2030 = vlaneseq
        %v2031 = vshrl.u32 %v2030, 7
        %v2032 = vsub.s32 %v2029, %v2031
        %v2033 = vrot.slane %v2026, %v2032
        %v2035 = vmax.f32 %v1228, %v2033
        %2036 = vst.msk [vmem:[#allocation3] sm:$0x1] %vm1226, %v2035
        %p2037 = scmp.eq.s32.totalorder %s22, 1
        // Predicated region
        $region60: #{channel_attention.1} parent=50 // pred_check
          %p2038 = pneg %p2037
        $region61: #{channel_attention.1} parent=50 // pred_check_branch
          %2040 = sbr.rel (%p2038) target = $region63
        $region62: #{channel_attention.1} parent=50 // pred_region
          %v2041 = vld [vmem:[#allocation2] sm:$0x1]
          %v2042 = vmul.f32 %v2041, 0.00048828125
          %v2043 = vld [vmem:[#allocation3] sm:$0x1]
          %v2044 = vld [vmem:[%s1] sm:$0xff]
          %v2045 = vld [vmem:[%s1 + $0x8] sm:$0xff]
          %v2046 = vld [vmem:[%s1 + $0x10] sm:$0xff]
          %v2047 = vld [vmem:[%s1 + $0x18] sm:$0xff]
          %v2048 = vld [vmem:[%s1 + $0x20] sm:$0xff]
          %v2049 = vld [vmem:[%s1 + $0x28] sm:$0xff]
          %v2050 = vld [vmem:[%s1 + $0x30] sm:$0xff]
          %v2051 = vld [vmem:[%s1 + $0x38] sm:$0xff]
          %v2052 = vld [vmem:[%s2] sm:$0xff]
          %vm2053 = vcmask 523264
          %v2055 = vsel %vm2053, %v2042, 0
          %2057 = vmatprep.subr.mxu0 0.0
          %2058 = vmatpush1.msra.mxu0 0.0
          %2059 = vmatprep.subr.mxu0 0.0
          %2060 = vmatpush1.msra.mxu0 0.0
          %2061 = vmatprep.subr.mxu0 0.0
          %2062 = vmatpush1.msra.mxu0 0.0
          %2063 = vmatprep.subr.mxu0 0.0
          %2064 = vmatpush1.msra.mxu0 0.0
          %2065 = vmatprep.subr.mxu0 0.0
          %2066 = vmatpush1.msra.mxu0 0.0
          %2067 = vmatprep.subr.mxu0 0.0
          %2068 = vmatpush1.msra.mxu0 0.0
          %2069 = vmatprep.subr.mxu0 0.0
          %2070 = vmatpush1.msra.mxu0 0.0
          %2071 = vmatprep.subr.mxu0 0.0
          %2072 = vmatpush1.msra.mxu0 0.0
          %2073 = vmatprep.subr.mxu0 0.0
          %2074 = vmatpush1.msra.mxu0 %v2051
          %2075 = vmatprep.subr.mxu0 0.0
          %2076 = vmatpush1.msra.mxu0 %v2050
          %2077 = vmatprep.subr.mxu0 0.0
          %2078 = vmatpush1.msra.mxu0 %v2049
          %2079 = vmatprep.subr.mxu0 0.0
          %2080 = vmatpush1.msra.mxu0 %v2048
          %2081 = vmatprep.subr.mxu0 0.0
          %2082 = vmatpush1.msra.mxu0 %v2047
          %2083 = vmatprep.subr.mxu0 0.0
          %2084 = vmatpush1.msra.mxu0 %v2046
          %2085 = vmatprep.subr.mxu0 0.0
          %2086 = vmatpush1.msra.mxu0 %v2045
          %2087 = vmatprep.subr.mxu0 0.0
          %2088 = vmatpush1.msra.mxu0 %v2044
          %2089 = vmatprep.subr.mxu0 0.0
          %2090 = vmatpush2.msra.mxu0 0.0
          %2091 = vmatprep.subr.mxu0 0.0
          %2092 = vmatpush2.msra.mxu0 0.0
          %2093 = vmatprep.subr.mxu0 0.0
          %2094 = vmatpush2.msra.mxu0 0.0
          %2095 = vmatprep.subr.mxu0 0.0
          %2096 = vmatpush2.msra.mxu0 0.0
          %2097 = vmatprep.subr.mxu0 0.0
          %2098 = vmatpush2.msra.mxu0 0.0
          %2099 = vmatprep.subr.mxu0 0.0
          %2100 = vmatpush2.msra.mxu0 0.0
          %2101 = vmatprep.subr.mxu0 0.0
          %2102 = vmatpush2.msra.mxu0 0.0
          %2103 = vmatprep.subr.mxu0 0.0
          %2104 = vmatpush2.msra.mxu0 0.0
          %2105 = vmatprep.subr.mxu0 0.0
          %2106 = vmatpush2.msra.mxu0 0.0
          %2107 = vmatprep.subr.mxu0 0.0
          %2108 = vmatpush2.msra.mxu0 0.0
          %2109 = vmatprep.subr.mxu0 0.0
          %2110 = vmatpush2.msra.mxu0 0.0
          %2111 = vmatprep.subr.mxu0 0.0
          %2112 = vmatpush2.msra.mxu0 0.0
          %2113 = vmatprep.subr.mxu0 0.0
          %2114 = vmatpush2.msra.mxu0 0.0
          %2115 = vmatprep.subr.mxu0 0.0
          %2116 = vmatpush2.msra.mxu0 0.0
          %2117 = vmatprep.subr.mxu0 0.0
          %2118 = vmatpush2.msra.mxu0 0.0
          %2119 = vmatprep.subr.mxu0 0.0
          %2120 = vmatpush2.msra.mxu0 0.0
          %2121 = vmatprep.mubr.f32.mxu0 0.0
          %2122 = vmatmul.mubr.f32.gmra.mxu0 %v2055
          %v2123 = vpop.f32.mrf.mxu0
          %v2124 = vadd.f32 0.0, %v2123
          %v2125 = vpop.f32.mrf.mxu0
          %2126 = vdwg.mxu0
          %v2127 = vmax.f32 %v2124, 0.0
          %v2129 = vsel %vm2053, %v2043, 0
          %2131 = vmatprep.subr.mxu0 0.0
          %2132 = vmatpush1.msra.mxu0 0.0
          %2133 = vmatprep.subr.mxu0 0.0
          %2134 = vmatpush1.msra.mxu0 0.0
          %2135 = vmatprep.subr.mxu0 0.0
          %2136 = vmatpush1.msra.mxu0 0.0
          %2137 = vmatprep.subr.mxu0 0.0
          %2138 = vmatpush1.msra.mxu0 0.0
          %2139 = vmatprep.subr.mxu0 0.0
          %2140 = vmatpush1.msra.mxu0 0.0
          %2141 = vmatprep.subr.mxu0 0.0
          %2142 = vmatpush1.msra.mxu0 0.0
          %2143 = vmatprep.subr.mxu0 0.0
          %2144 = vmatpush1.msra.mxu0 0.0
          %2145 = vmatprep.subr.mxu0 0.0
          %2146 = vmatpush1.msra.mxu0 0.0
          %2147 = vmatprep.subr.mxu0 0.0
          %2148 = vmatpush1.msra.mxu0 %v2051
          %2149 = vmatprep.subr.mxu0 0.0
          %2150 = vmatpush1.msra.mxu0 %v2050
          %2151 = vmatprep.subr.mxu0 0.0
          %2152 = vmatpush1.msra.mxu0 %v2049
          %2153 = vmatprep.subr.mxu0 0.0
          %2154 = vmatpush1.msra.mxu0 %v2048
          %2155 = vmatprep.subr.mxu0 0.0
          %2156 = vmatpush1.msra.mxu0 %v2047
          %2157 = vmatprep.subr.mxu0 0.0
          %2158 = vmatpush1.msra.mxu0 %v2046
          %2159 = vmatprep.subr.mxu0 0.0
          %2160 = vmatpush1.msra.mxu0 %v2045
          %2161 = vmatprep.subr.mxu0 0.0
          %2162 = vmatpush1.msra.mxu0 %v2044
          %2163 = vmatprep.subr.mxu0 0.0
          %2164 = vmatpush2.msra.mxu0 0.0
          %2165 = vmatprep.subr.mxu0 0.0
          %2166 = vmatpush2.msra.mxu0 0.0
          %2167 = vmatprep.subr.mxu0 0.0
          %2168 = vmatpush2.msra.mxu0 0.0
          %2169 = vmatprep.subr.mxu0 0.0
          %2170 = vmatpush2.msra.mxu0 0.0
          %2171 = vmatprep.subr.mxu0 0.0
          %2172 = vmatpush2.msra.mxu0 0.0
          %2173 = vmatprep.subr.mxu0 0.0
          %2174 = vmatpush2.msra.mxu0 0.0
          %2175 = vmatprep.subr.mxu0 0.0
          %2176 = vmatpush2.msra.mxu0 0.0
          %2177 = vmatprep.subr.mxu0 0.0
          %2178 = vmatpush2.msra.mxu0 0.0
          %2179 = vmatprep.subr.mxu0 0.0
          %2180 = vmatpush2.msra.mxu0 0.0
          %2181 = vmatprep.subr.mxu0 0.0
          %2182 = vmatpush2.msra.mxu0 0.0
          %2183 = vmatprep.subr.mxu0 0.0
          %2184 = vmatpush2.msra.mxu0 0.0
          %2185 = vmatprep.subr.mxu0 0.0
          %2186 = vmatpush2.msra.mxu0 0.0
          %2187 = vmatprep.subr.mxu0 0.0
          %2188 = vmatpush2.msra.mxu0 0.0
          %2189 = vmatprep.subr.mxu0 0.0
          %2190 = vmatpush2.msra.mxu0 0.0
          %2191 = vmatprep.subr.mxu0 0.0
          %2192 = vmatpush2.msra.mxu0 0.0
          %2193 = vmatprep.subr.mxu0 0.0
          %2194 = vmatpush2.msra.mxu0 0.0
          %2195 = vmatprep.mubr.f32.mxu0 0.0
          %2196 = vmatmul.mubr.f32.gmra.mxu0 %v2129
          %v2197 = vpop.f32.mrf.mxu0
          %v2198 = vadd.f32 0.0, %v2197
          %v2199 = vpop.f32.mrf.mxu0
          %2200 = vdwg.mxu0
          %v2201 = vmax.f32 %v2198, 0.0
          %v2202 = vadd.f32 %v2127, %v2201
          %vm2203 = vcmask 64512
          %v2205 = vsel %vm2203, %v2202, 0
          %2207 = vmatprep.subr.mxu0 0.0
          %2208 = vmatpush1.msra.mxu0 0.0
          %2209 = vmatprep.subr.mxu0 0.0
          %2210 = vmatpush1.msra.mxu0 0.0
          %2211 = vmatprep.subr.mxu0 0.0
          %2212 = vmatpush1.msra.mxu0 0.0
          %2213 = vmatprep.subr.mxu0 0.0
          %2214 = vmatpush1.msra.mxu0 0.0
          %2215 = vmatprep.subr.mxu0 0.0
          %2216 = vmatpush1.msra.mxu0 0.0
          %2217 = vmatprep.subr.mxu0 0.0
          %2218 = vmatpush1.msra.mxu0 0.0
          %2219 = vmatprep.subr.mxu0 0.0
          %2220 = vmatpush1.msra.mxu0 0.0
          %2221 = vmatprep.subr.mxu0 0.0
          %2222 = vmatpush1.msra.mxu0 0.0
          %2223 = vmatprep.subr.mxu0 0.0
          %2224 = vmatpush1.msra.mxu0 0.0
          %2225 = vmatprep.subr.mxu0 0.0
          %2226 = vmatpush1.msra.mxu0 0.0
          %2227 = vmatprep.subr.mxu0 0.0
          %2228 = vmatpush1.msra.mxu0 0.0
          %2229 = vmatprep.subr.mxu0 0.0
          %2230 = vmatpush1.msra.mxu0 0.0
          %2231 = vmatprep.subr.mxu0 0.0
          %2232 = vmatpush1.msra.mxu0 0.0
          %2233 = vmatprep.subr.mxu0 0.0
          %2234 = vmatpush1.msra.mxu0 0.0
          %2235 = vmatprep.subr.mxu0 0.0
          %2236 = vmatpush1.msra.mxu0 0.0
          %2237 = vmatprep.subr.mxu0 0.0
          %2238 = vmatpush1.msra.mxu0 %v2052
          %2239 = vmatprep.subr.mxu0 0.0
          %2240 = vmatpush2.msra.mxu0 0.0
          %2241 = vmatprep.subr.mxu0 0.0
          %2242 = vmatpush2.msra.mxu0 0.0
          %2243 = vmatprep.subr.mxu0 0.0
          %2244 = vmatpush2.msra.mxu0 0.0
          %2245 = vmatprep.subr.mxu0 0.0
          %2246 = vmatpush2.msra.mxu0 0.0
          %2247 = vmatprep.subr.mxu0 0.0
          %2248 = vmatpush2.msra.mxu0 0.0
          %2249 = vmatprep.subr.mxu0 0.0
          %2250 = vmatpush2.msra.mxu0 0.0
          %2251 = vmatprep.subr.mxu0 0.0
          %2252 = vmatpush2.msra.mxu0 0.0
          %2253 = vmatprep.subr.mxu0 0.0
          %2254 = vmatpush2.msra.mxu0 0.0
          %2255 = vmatprep.subr.mxu0 0.0
          %2256 = vmatpush2.msra.mxu0 0.0
          %2257 = vmatprep.subr.mxu0 0.0
          %2258 = vmatpush2.msra.mxu0 0.0
          %2259 = vmatprep.subr.mxu0 0.0
          %2260 = vmatpush2.msra.mxu0 0.0
          %2261 = vmatprep.subr.mxu0 0.0
          %2262 = vmatpush2.msra.mxu0 0.0
          %2263 = vmatprep.subr.mxu0 0.0
          %2264 = vmatpush2.msra.mxu0 0.0
          %2265 = vmatprep.subr.mxu0 0.0
          %2266 = vmatpush2.msra.mxu0 0.0
          %2267 = vmatprep.subr.mxu0 0.0
          %2268 = vmatpush2.msra.mxu0 0.0
          %2269 = vmatprep.subr.mxu0 0.0
          %2270 = vmatpush2.msra.mxu0 0.0
          %2271 = vmatprep.mubr.f32.mxu0 0.0
          %2272 = vmatmul.mubr.f32.gmra.mxu0 %v2205
          %v2273 = vpop.f32.mrf.mxu0
          %v2274 = vadd.f32 0.0, %v2273
          %v2275 = vpop.f32.mrf.mxu0
          %2276 = vdwg.mxu0
          %v2277 = vxor.u32 %v2274, 2147483648
          %v2278 = vmul.f32 %v2277, 1.442695
          %v2279 = vpow.pop %v2278
          %v2280 = vadd.f32 %v2279, 1.0
          %v2281 = vrcp.pop %v2280
          %v2282 = vmul.f32 1.0, %v2281
          %2283 = vst.msk [vmem:[%s329] sm:$0x1] %vm1226, %v2282
        $region63: #{channel_attention.1} parent=50 // pred_fallthru
          _
        %s2284 = sand.u32 %s107, 1
        %s2285 = scalar_lea.sflag [#allocation6], %s2284
        %s2286 = sand.u32 %s107, 1
        %s2287 = scalar_lea.vmem [#allocation5], %s2286
        // Predicated region
        $region64: #{channel_attention.1} parent=50 // pred_check
          %p2288 = pneg %p117
        $region65: #{channel_attention.1} parent=50 // pred_check_branch
          %2290 = sbr.rel (%p2288) target = $region67
        $region66: #{channel_attention.1} parent=50 // pred_region
          %s2292 = ssub.s32 16, 16
          %2293 = vsyncadd %s2285, %s2292
          %s2294 = smul.addr %s21, 16
          %s2295 = scalar_lea.hbm %s3, %s2294
          %s2297 = sshll.u32 %s2287, 4
          %s2298 = int_to_ptr.vmem [resolvable:$true] %s2297
          %2300 = dma.vmem_to_hbm [thread:$0]  %s2298, 16, %s2295, %s2285
        $region67: #{channel_attention.1} parent=50 // pred_fallthru
          _
      $region51: #{channel_attention.1} parent=5 // pred_fallthru
        _
      %p2301 = scmp.le.s32.totalorder 2, %s12
      // Predicated region
      $region68: #{channel_attention.1} parent=5 // pred_check
        %p2302 = pneg %p2301
      $region69: #{channel_attention.1} parent=5 // pred_check_branch
        %2304 = sbr.rel (%p2302) target = $region71
      $region70: #{channel_attention.1} parent=5 // pred_region
        %s2305 = ssub.s32 %s12, 2
        // Predicated region
        $region72: #{channel_attention.1} parent=70 // pred_check
          %p2306 = pneg %p123
        $region73: #{channel_attention.1} parent=70 // pred_check_branch
          %2308 = sbr.rel (%p2306) target = $region75
        $region74: #{channel_attention.1} parent=70 // pred_region
          %s2309 = sand.u32 %s108, 1
          %s2310 = scalar_lea.sflag [#allocation6], %s2309
          %s2311 = sand.u32 %s108, 1
          %s2312 = scalar_lea.vmem [#allocation5], %s2311
          %2313 = dma.done %s2310, 16
        $region75: #{channel_attention.1} parent=70 // pred_fallthru
          _
      $region71: #{channel_attention.1} parent=5 // pred_fallthru
        _
    $region6: #{channel_attention.1} parent=1 // loop_footer
      %s16 = sadd.s32 1, %s12
    $region7: #{channel_attention.1} parent=1 // loop_footer_branch
      %11 = sbr.rel target = $region3
    $region8: #{channel_attention.1} parent=1 // loop_exit
      _
    %2314 = vsyncpa [#allocation6], 1
    %s2315 = scalar_lea.sflag [#allocation6], 1
    %2316 = vsyncpa %s2315, 1

</llo_original>
